<compile_context>
chip_gen: v6e
topology: v6e:2x2x1
jax: 0.10.0
libtpu: 0.0.40
codegen_flags: <defaults>
</compile_context>

<pallas_src>
import jax
import jax.numpy as jnp
from jax import lax
from jax.experimental import pallas as pl
from jax.experimental.pallas import tpu as pltpu


# --------------------------- fused model kernel ------------------------------
def make_fused_kernel(T, Bp, H, num_layers):
    """num_layers stacked LSTMs (zero init state) + final FC, fully fused.

    Ref layout (in order):
      x_ref                  : (T*Bp, D0)  bf16, time-major, batch-padded input
      per layer l in [0, L):
        wih_ref[l]           : (D_l, 4H)   bf16, gate-packed [i|f|g|o] on lanes
        whh_ref[l]           : (H,   4H)   bf16, gate-packed
        b_ref[l]             : (1,   4H)   f32,  b_ih + b_hh, gate-packed
      wfc_ref                : (H, O)      bf16
      bfc_ref                : (1, O)      f32
      out_ref                : (Bp, O)     f32
      gx_sc  (scratch)       : (T*Bp, 4H)  f32, hoisted gate projection
      seq_sc0/seq_sc1 (scr.) : (T*Bp, H)   bf16, inter-layer hidden (ping-pong)
    """

    def kernel(*args):
        x_ref = args[0]
        layer_refs = args[1:1 + 3 * num_layers]
        wfc_ref = args[1 + 3 * num_layers]
        bfc_ref = args[2 + 3 * num_layers]
        out_ref = args[3 + 3 * num_layers]
        gx_sc = args[4 + 3 * num_layers]
        seq_scs = (args[5 + 3 * num_layers], args[6 + 3 * num_layers])

        h = None
        for layer in range(num_layers):
            wih_ref = layer_refs[3 * layer + 0]
            whh_ref = layer_refs[3 * layer + 1]
            b_ref = layer_refs[3 * layer + 2]
            last_layer = layer == num_layers - 1
            wr_sc = seq_scs[layer % 2]          # written this layer (if any)
            rd_sc = seq_scs[(layer - 1) % 2]    # read this layer (layer > 0)

            # Hoisted, lane-dense input projection for the WHOLE sequence:
            # one (T*Bp, D) @ (D, 4H) bf16 matmul (f32 accum), parked in VMEM
            # scratch so the unrolled time loop carries no big live values.
            seq_bf = x_ref[...] if layer == 0 else rd_sc[...]
            gx_sc[...] = (
                jnp.dot(seq_bf, wih_ref[...], preferred_element_type=jnp.float32)
                + b_ref[...]
            )

            whh = whh_ref[...]                  # (H, 4H) bf16, resident
            h0 = jnp.zeros((Bp, H), jnp.float32)
            c0 = jnp.zeros((Bp, H), jnp.float32)

            def step(t, carry, whh=whh, wr_sc=wr_sc, last_layer=last_layer):
                h, c = carry
                start = pl.multiple_of(t * Bp, Bp)
                # ONE 128-lane-wide MXU matmul on the recurrent critical path.
                gates = gx_sc[pl.ds(start, Bp), :] + jnp.dot(
                    h.astype(jnp.bfloat16), whh,
                    preferred_element_type=jnp.float32)          # (Bp, 4H)
                # Packed nonlinearities: one full-width sigmoid + one tanh(g)
                # + one tanh(c) per step (EUP is on the serial path).
                sig = jax.nn.sigmoid(gates)
                i_g = sig[:, 0 * H:1 * H]
                f_g = sig[:, 1 * H:2 * H]
                o_g = sig[:, 3 * H:4 * H]
                g_g = jnp.tanh(gates[:, 2 * H:3 * H])
                c = f_g * c + i_g * g_g
                h = o_g * jnp.tanh(c)
                if not last_layer:
                    wr_sc[pl.ds(start, Bp), :] = h.astype(jnp.bfloat16)
                return h, c

            h, _ = lax.fori_loop(0, T, step, (h0, c0), unroll=True)

        # Final Linear on the last timestep's hidden state.
        out_ref[...] = (
            jnp.dot(h.astype(jnp.bfloat16), wfc_ref[...],
                    preferred_element_type=jnp.float32)
            + bfc_ref[...]
        )

    return kernel


# ------------------------------- full forward --------------------------------
def sentiment_lstm_forward(x, params):
    """x: (B, T, input_size) batch-first, like the PyTorch module."""
    x = x.astype(jnp.float32)
    B, T, D = x.shape
    num_layers = len(params["lstm"])
    H = params["lstm"][0][1].shape[1]                 # w_hh: (4H, H)
    O = params["fc_w"].shape[0]
    Bp = max(8, ((B + 7) // 8) * 8)                   # pad batch to sublane mult

    # Pad batch, go time-major, cast to bf16 once (tiny fused XLA prologue);
    # everything else runs inside one fused gridless Pallas kernel.
    x_p = jnp.zeros((Bp, T, D), jnp.float32).at[:B].set(x)
    x_tm = jnp.transpose(x_p, (1, 0, 2)).reshape(T * Bp, D).astype(jnp.bfloat16)

    inputs = [x_tm]
    in_specs = [pl.BlockSpec((T * Bp, D), lambda: (0, 0))]
    for (w_ih, w_hh, b_ih, b_hh) in params["lstm"]:
        d_in = w_ih.shape[1]
        # PyTorch packs gates as [i, f, g, o] along the 4H axis; transposing
        # keeps that order along the lane-dense (4H == 128) last dim.
        wih_p = jnp.transpose(w_ih).astype(jnp.bfloat16)          # (d_in, 4H)
        whh_p = jnp.transpose(w_hh).astype(jnp.bfloat16)          # (H, 4H)
        b_p = (b_ih + b_hh).reshape(1, 4 * H).astype(jnp.float32)  # (1, 4H)
        inputs += [wih_p, whh_p, b_p]
        in_specs += [
            pl.BlockSpec((d_in, 4 * H), lambda: (0, 0)),
            pl.BlockSpec((H, 4 * H), lambda: (0, 0)),
            pl.BlockSpec((1, 4 * H), lambda: (0, 0)),
        ]
    wfc_t = jnp.transpose(params["fc_w"]).astype(jnp.bfloat16)    # (H, O)
    bfc = params["fc_b"].reshape(1, O).astype(jnp.float32)        # (1, O)
    inputs += [wfc_t, bfc]
    in_specs += [
        pl.BlockSpec((H, O), lambda: (0, 0)),
        pl.BlockSpec((1, O), lambda: (0, 0)),
    ]

    out = pl.pallas_call(
        make_fused_kernel(T, Bp, H, num_layers),
        out_shape=jax.ShapeDtypeStruct((Bp, O), jnp.float32),
        in_specs=in_specs,
        out_specs=pl.BlockSpec((Bp, O), lambda: (0, 0)),
        scratch_shapes=[
            pltpu.VMEM((T * Bp, 4 * H), jnp.float32),   # hoisted gate proj
            pltpu.VMEM((T * Bp, H), jnp.bfloat16),      # hidden seq slab 0
            pltpu.VMEM((T * Bp, H), jnp.bfloat16),      # hidden seq slab 1
        ],
    )(*inputs)
    return out[:B]


# ---------------------------- pure-JAX reference ------------------------------
def sentiment_lstm_ref(x, params):
    B = x.shape[0]
    h_seq = jnp.transpose(x, (1, 0, 2))
    for (w_ih, w_hh, b_ih, b_hh) in params["lstm"]:
        H = w_hh.shape[1]

        def step(carry, x_t, w_ih=w_ih, w_hh=w_hh, b_ih=b_ih, b_hh=b_hh):
            h, c = carry
            gates = x_t @ w_ih.T + h @ w_hh.T + b_ih + b_hh
            i, f, g, o = jnp.split(gates, 4, axis=-1)
            c = jax.nn.sigmoid(f) * c + jax.nn.sigmoid(i) * jnp.tanh(g)
            h = jax.nn.sigmoid(o) * jnp.tanh(c)
            return (h, c), h

        init = (jnp.zeros((B, H), jnp.float32), jnp.zeros((B, H), jnp.float32))
        _, h_seq = lax.scan(step, init, h_seq)
    return h_seq[-1] @ params["fc_w"].T + params["fc_b"]


# ---------------------------------- main --------------------------------------
def init_params(key, input_size, hidden_size, num_layers, output_size):
    k = 1.0 / jnp.sqrt(hidden_size)
    params = {"lstm": []}
    for layer in range(num_layers):
        d_in = input_size if layer == 0 else hidden_size
        key, k1, k2, k3, k4 = jax.random.split(key, 5)
        params["lstm"].append((
            jax.random.uniform(k1, (4 * hidden_size, d_in), jnp.float32, -k, k),
            jax.random.uniform(k2, (4 * hidden_size, hidden_size), jnp.float32, -k, k),
            jax.random.uniform(k3, (4 * hidden_size,), jnp.float32, -k, k),
            jax.random.uniform(k4, (4 * hidden_size,), jnp.float32, -k, k),
        ))
    key, k5, k6 = jax.random.split(key, 3)
    params["fc_w"] = jax.random.uniform(k5, (output_size, hidden_size), jnp.float32, -k, k)
    params["fc_b"] = jax.random.uniform(k6, (output_size,), jnp.float32, -k, k)
    return params


if __name__ == "__main__":
    input_size, hidden_size, num_layers, output_size = 16, 32, 2, 4
    batch, seq = 2, 8

    key = jax.random.PRNGKey(0)
    key, xk = jax.random.split(key)
    x = jax.random.normal(xk, (batch, seq, input_size), jnp.float32)
    params = init_params(key, input_size, hidden_size, num_layers, output_size)

    fwd = jax.jit(sentiment_lstm_forward)
    out = fwd(x, params)
    out = jax.block_until_ready(out)

    ref = sentiment_lstm_ref(x, params)
    assert out.shape == (batch, output_size)
    # bf16 MXU operands with f32 accumulation -> looser tolerance than f32.
    assert jnp.allclose(out, ref, atol=2e-2, rtol=2e-2), "Pallas output mismatch vs reference"

    print("KERNEL_OK")
</pallas_src>

<mosaic_0001>
module attributes {stable_mosaic.version = 11 : i64} {
  func.func @kernel(%arg0: memref<64x16xbf16, #tpu.memory_space<vmem>>, %arg1: memref<16x128xbf16, #tpu.memory_space<vmem>>, %arg2: memref<32x128xbf16, #tpu.memory_space<vmem>>, %arg3: memref<1x128xf32, #tpu.memory_space<vmem>>, %arg4: memref<32x128xbf16, #tpu.memory_space<vmem>>, %arg5: memref<32x128xbf16, #tpu.memory_space<vmem>>, %arg6: memref<1x128xf32, #tpu.memory_space<vmem>>, %arg7: memref<32x4xbf16, #tpu.memory_space<vmem>>, %arg8: memref<1x4xf32, #tpu.memory_space<vmem>>, %arg9: memref<8x4xf32, #tpu.memory_space<vmem>>, %arg10: memref<64x128xf32, #tpu.memory_space<vmem>>, %arg11: memref<64x32xbf16, #tpu.memory_space<vmem>>, %arg12: memref<64x32xbf16, #tpu.memory_space<vmem>>) attributes {dimension_semantics = [], scalar_prefetch = 0 : i64, scratch_operands = 3 : i64, tpu.core_type = #tpu.core_type<tc>} {
    %c0 = arith.constant 0 : index
    %c0_0 = arith.constant 0 : index
    %0 = vector.load %arg0[%c0, %c0_0] : memref<64x16xbf16, #tpu.memory_space<vmem>>, vector<64x16xbf16>
    %c0_1 = arith.constant 0 : index
    %c0_2 = arith.constant 0 : index
    %1 = vector.load %arg1[%c0_1, %c0_2] : memref<16x128xbf16, #tpu.memory_space<vmem>>, vector<16x128xbf16>
    %cst = arith.constant dense<0.000000e+00> : vector<64x128xf32>
    %2 = tpu.matmul %0, %1, %cst {dimension_numbers = #tpu.dot_dimension_numbers<[1], [0], [0], [1], [0, 0, 1, 1], [], []>} : vector<64x16xbf16>, vector<16x128xbf16>, vector<64x128xf32> -> vector<64x128xf32>
    %c0_3 = arith.constant 0 : index
    %c0_4 = arith.constant 0 : index
    %3 = vector.load %arg3[%c0_3, %c0_4] : memref<1x128xf32, #tpu.memory_space<vmem>>, vector<1x128xf32>
    %4 = vector.broadcast %3 : vector<1x128xf32> to vector<64x128xf32>
    %5 = arith.addf %2, %4 : vector<64x128xf32>
    %c0_5 = arith.constant 0 : index
    %c0_6 = arith.constant 0 : index
    %6 = vector.load %arg10[%c0_5, %c0_6] : memref<64x128xf32, #tpu.memory_space<vmem>>, vector<64x128xf32>
    tpu.vector_store %arg10[%c0_5, %c0_6], %5 {strides = array<i32>} : memref<64x128xf32, #tpu.memory_space<vmem>>, vector<64x128xf32>,
    %c0_7 = arith.constant 0 : index
    %c0_8 = arith.constant 0 : index
    %7 = vector.load %arg2[%c0_7, %c0_8] : memref<32x128xbf16, #tpu.memory_space<vmem>>, vector<32x128xbf16>
    %cst_9 = arith.constant 0.000000e+00 : f32
    %8 = vector.broadcast %cst_9 : f32 to vector<8x32xf32>
    %cst_10 = arith.constant 0.000000e+00 : f32
    %9 = vector.broadcast %cst_10 : f32 to vector<8x32xf32>
    %c0_i32 = arith.constant 0 : i32
    %c8_i32 = arith.constant 8 : i32
    %10 = arith.muli %c0_i32, %c8_i32 : i32
    %11 = tpu.assume_multiple %10, 8 : i32
    %12 = arith.index_cast %11 : i32 to index
    %c0_11 = arith.constant 0 : index
    %13 = vector.load %arg10[%12, %c0_11] : memref<64x128xf32, #tpu.memory_space<vmem>>, vector<8x128xf32>
    %14 = arith.truncf %8 : vector<8x32xf32> to vector<8x32xbf16>
    %cst_12 = arith.constant dense<0.000000e+00> : vector<8x128xf32>
    %15 = tpu.matmul %14, %7, %cst_12 {dimension_numbers = #tpu.dot_dimension_numbers<[1], [0], [0], [1], [0, 0, 1, 1], [], []>} : vector<8x32xbf16>, vector<32x128xbf16>, vector<8x128xf32> -> vector<8x128xf32>
    %16 = arith.addf %13, %15 : vector<8x128xf32>
    %17 = arith.negf %16 : vector<8x128xf32>
    %18 = math.exp %17 : vector<8x128xf32>
    %cst_13 = arith.constant 1.000000e+00 : f32
    %19 = vector.broadcast %cst_13 : f32 to vector<8x128xf32>
    %20 = arith.addf %19, %18 : vector<8x128xf32>
    %21 = arith.divf %19, %20 : vector<8x128xf32>
    %22 = vector.extract_strided_slice %21 {offsets = [0, 0], sizes = [8, 32], strides = [1, 1]} : vector<8x128xf32> to vector<8x32xf32>
    %23 = vector.extract_strided_slice %21 {offsets = [0, 32], sizes = [8, 32], strides = [1, 1]} : vector<8x128xf32> to vector<8x32xf32>
    %24 = vector.extract_strided_slice %21 {offsets = [0, 96], sizes = [8, 32], strides = [1, 1]} : vector<8x128xf32> to vector<8x32xf32>
    %25 = vector.extract_strided_slice %16 {offsets = [0, 64], sizes = [8, 32], strides = [1, 1]} : vector<8x128xf32> to vector<8x32xf32>
    %26 = math.tanh %25 : vector<8x32xf32>
    %27 = arith.mulf %23, %9 : vector<8x32xf32>
    %28 = arith.mulf %22, %26 : vector<8x32xf32>
    %29 = arith.addf %27, %28 : vector<8x32xf32>
    %30 = math.tanh %29 : vector<8x32xf32>
    %31 = arith.mulf %24, %30 : vector<8x32xf32>
    %32 = arith.truncf %31 : vector<8x32xf32> to vector<8x32xbf16>
    %33 = arith.index_cast %11 : i32 to index
    %c0_14 = arith.constant 0 : index
    %34 = vector.load %arg11[%33, %c0_14] : memref<64x32xbf16, #tpu.memory_space<vmem>>, vector<8x32xbf16>
    tpu.vector_store %arg11[%33, %c0_14], %32 {strides = array<i32>} : memref<64x32xbf16, #tpu.memory_space<vmem>>, vector<8x32xbf16>,
    %c1_i32 = arith.constant 1 : i32
    %c8_i32_15 = arith.constant 8 : i32
    %35 = arith.muli %c1_i32, %c8_i32_15 : i32
    %36 = tpu.assume_multiple %35, 8 : i32
    %37 = arith.index_cast %36 : i32 to index
    %c0_16 = arith.constant 0 : index
    %38 = vector.load %arg10[%37, %c0_16] : memref<64x128xf32, #tpu.memory_space<vmem>>, vector<8x128xf32>
    %39 = arith.truncf %31 : vector<8x32xf32> to vector<8x32xbf16>
    %cst_17 = arith.constant dense<0.000000e+00> : vector<8x128xf32>
    %40 = tpu.matmul %39, %7, %cst_17 {dimension_numbers = #tpu.dot_dimension_numbers<[1], [0], [0], [1], [0, 0, 1, 1], [], []>} : vector<8x32xbf16>, vector<32x128xbf16>, vector<8x128xf32> -> vector<8x128xf32>
    %41 = arith.addf %38, %40 : vector<8x128xf32>
    %42 = arith.negf %41 : vector<8x128xf32>
    %43 = math.exp %42 : vector<8x128xf32>
    %cst_18 = arith.constant 1.000000e+00 : f32
    %44 = vector.broadcast %cst_18 : f32 to vector<8x128xf32>
    %45 = arith.addf %44, %43 : vector<8x128xf32>
    %46 = arith.divf %44, %45 : vector<8x128xf32>
    %47 = vector.extract_strided_slice %46 {offsets = [0, 0], sizes = [8, 32], strides = [1, 1]} : vector<8x128xf32> to vector<8x32xf32>
    %48 = vector.extract_strided_slice %46 {offsets = [0, 32], sizes = [8, 32], strides = [1, 1]} : vector<8x128xf32> to vector<8x32xf32>
    %49 = vector.extract_strided_slice %46 {offsets = [0, 96], sizes = [8, 32], strides = [1, 1]} : vector<8x128xf32> to vector<8x32xf32>
    %50 = vector.extract_strided_slice %41 {offsets = [0, 64], sizes = [8, 32], strides = [1, 1]} : vector<8x128xf32> to vector<8x32xf32>
    %51 = math.tanh %50 : vector<8x32xf32>
    %52 = arith.mulf %48, %29 : vector<8x32xf32>
    %53 = arith.mulf %47, %51 : vector<8x32xf32>
    %54 = arith.addf %52, %53 : vector<8x32xf32>
    %55 = math.tanh %54 : vector<8x32xf32>
    %56 = arith.mulf %49, %55 : vector<8x32xf32>
    %57 = arith.truncf %56 : vector<8x32xf32> to vector<8x32xbf16>
    %58 = arith.index_cast %36 : i32 to index
    %c0_19 = arith.constant 0 : index
    %59 = vector.load %arg11[%58, %c0_19] : memref<64x32xbf16, #tpu.memory_space<vmem>>, vector<8x32xbf16>
    tpu.vector_store %arg11[%58, %c0_19], %57 {strides = array<i32>} : memref<64x32xbf16, #tpu.memory_space<vmem>>, vector<8x32xbf16>,
    %c2_i32 = arith.constant 2 : i32
    %c8_i32_20 = arith.constant 8 : i32
    %60 = arith.muli %c2_i32, %c8_i32_20 : i32
    %61 = tpu.assume_multiple %60, 8 : i32
    %62 = arith.index_cast %61 : i32 to index
    %c0_21 = arith.constant 0 : index
    %63 = vector.load %arg10[%62, %c0_21] : memref<64x128xf32, #tpu.memory_space<vmem>>, vector<8x128xf32>
    %64 = arith.truncf %56 : vector<8x32xf32> to vector<8x32xbf16>
    %cst_22 = arith.constant dense<0.000000e+00> : vector<8x128xf32>
    %65 = tpu.matmul %64, %7, %cst_22 {dimension_numbers = #tpu.dot_dimension_numbers<[1], [0], [0], [1], [0, 0, 1, 1], [], []>} : vector<8x32xbf16>, vector<32x128xbf16>, vector<8x128xf32> -> vector<8x128xf32>
    %66 = arith.addf %63, %65 : vector<8x128xf32>
    %67 = arith.negf %66 : vector<8x128xf32>
    %68 = math.exp %67 : vector<8x128xf32>
    %cst_23 = arith.constant 1.000000e+00 : f32
    %69 = vector.broadcast %cst_23 : f32 to vector<8x128xf32>
    %70 = arith.addf %69, %68 : vector<8x128xf32>
    %71 = arith.divf %69, %70 : vector<8x128xf32>
    %72 = vector.extract_strided_slice %71 {offsets = [0, 0], sizes = [8, 32], strides = [1, 1]} : vector<8x128xf32> to vector<8x32xf32>
    %73 = vector.extract_strided_slice %71 {offsets = [0, 32], sizes = [8, 32], strides = [1, 1]} : vector<8x128xf32> to vector<8x32xf32>
    %74 = vector.extract_strided_slice %71 {offsets = [0, 96], sizes = [8, 32], strides = [1, 1]} : vector<8x128xf32> to vector<8x32xf32>
    %75 = vector.extract_strided_slice %66 {offsets = [0, 64], sizes = [8, 32], strides = [1, 1]} : vector<8x128xf32> to vector<8x32xf32>
    %76 = math.tanh %75 : vector<8x32xf32>
    %77 = arith.mulf %73, %54 : vector<8x32xf32>
    %78 = arith.mulf %72, %76 : vector<8x32xf32>
    %79 = arith.addf %77, %78 : vector<8x32xf32>
    %80 = math.tanh %79 : vector<8x32xf32>
    %81 = arith.mulf %74, %80 : vector<8x32xf32>
    %82 = arith.truncf %81 : vector<8x32xf32> to vector<8x32xbf16>
    %83 = arith.index_cast %61 : i32 to index
    %c0_24 = arith.constant 0 : index
    %84 = vector.load %arg11[%83, %c0_24] : memref<64x32xbf16, #tpu.memory_space<vmem>>, vector<8x32xbf16>
    tpu.vector_store %arg11[%83, %c0_24], %82 {strides = array<i32>} : memref<64x32xbf16, #tpu.memory_space<vmem>>, vector<8x32xbf16>,
    %c3_i32 = arith.constant 3 : i32
    %c8_i32_25 = arith.constant 8 : i32
    %85 = arith.muli %c3_i32, %c8_i32_25 : i32
    %86 = tpu.assume_multiple %85, 8 : i32
    %87 = arith.index_cast %86 : i32 to index
    %c0_26 = arith.constant 0 : index
    %88 = vector.load %arg10[%87, %c0_26] : memref<64x128xf32, #tpu.memory_space<vmem>>, vector<8x128xf32>
    %89 = arith.truncf %81 : vector<8x32xf32> to vector<8x32xbf16>
    %cst_27 = arith.constant dense<0.000000e+00> : vector<8x128xf32>
    %90 = tpu.matmul %89, %7, %cst_27 {dimension_numbers = #tpu.dot_dimension_numbers<[1], [0], [0], [1], [0, 0, 1, 1], [], []>} : vector<8x32xbf16>, vector<32x128xbf16>, vector<8x128xf32> -> vector<8x128xf32>
    %91 = arith.addf %88, %90 : vector<8x128xf32>
    %92 = arith.negf %91 : vector<8x128xf32>
    %93 = math.exp %92 : vector<8x128xf32>
    %cst_28 = arith.constant 1.000000e+00 : f32
    %94 = vector.broadcast %cst_28 : f32 to vector<8x128xf32>
    %95 = arith.addf %94, %93 : vector<8x128xf32>
    %96 = arith.divf %94, %95 : vector<8x128xf32>
    %97 = vector.extract_strided_slice %96 {offsets = [0, 0], sizes = [8, 32], strides = [1, 1]} : vector<8x128xf32> to vector<8x32xf32>
    %98 = vector.extract_strided_slice %96 {offsets = [0, 32], sizes = [8, 32], strides = [1, 1]} : vector<8x128xf32> to vector<8x32xf32>
    %99 = vector.extract_strided_slice %96 {offsets = [0, 96], sizes = [8, 32], strides = [1, 1]} : vector<8x128xf32> to vector<8x32xf32>
    %100 = vector.extract_strided_slice %91 {offsets = [0, 64], sizes = [8, 32], strides = [1, 1]} : vector<8x128xf32> to vector<8x32xf32>
    %101 = math.tanh %100 : vector<8x32xf32>
    %102 = arith.mulf %98, %79 : vector<8x32xf32>
    %103 = arith.mulf %97, %101 : vector<8x32xf32>
    %104 = arith.addf %102, %103 : vector<8x32xf32>
    %105 = math.tanh %104 : vector<8x32xf32>
    %106 = arith.mulf %99, %105 : vector<8x32xf32>
    %107 = arith.truncf %106 : vector<8x32xf32> to vector<8x32xbf16>
    %108 = arith.index_cast %86 : i32 to index
    %c0_29 = arith.constant 0 : index
    %109 = vector.load %arg11[%108, %c0_29] : memref<64x32xbf16, #tpu.memory_space<vmem>>, vector<8x32xbf16>
    tpu.vector_store %arg11[%108, %c0_29], %107 {strides = array<i32>} : memref<64x32xbf16, #tpu.memory_space<vmem>>, vector<8x32xbf16>,
    %c4_i32 = arith.constant 4 : i32
    %c8_i32_30 = arith.constant 8 : i32
    %110 = arith.muli %c4_i32, %c8_i32_30 : i32
    %111 = tpu.assume_multiple %110, 8 : i32
    %112 = arith.index_cast %111 : i32 to index
    %c0_31 = arith.constant 0 : index
    %113 = vector.load %arg10[%112, %c0_31] : memref<64x128xf32, #tpu.memory_space<vmem>>, vector<8x128xf32>
    %114 = arith.truncf %106 : vector<8x32xf32> to vector<8x32xbf16>
    %cst_32 = arith.constant dense<0.000000e+00> : vector<8x128xf32>
    %115 = tpu.matmul %114, %7, %cst_32 {dimension_numbers = #tpu.dot_dimension_numbers<[1], [0], [0], [1], [0, 0, 1, 1], [], []>} : vector<8x32xbf16>, vector<32x128xbf16>, vector<8x128xf32> -> vector<8x128xf32>
    %116 = arith.addf %113, %115 : vector<8x128xf32>
    %117 = arith.negf %116 : vector<8x128xf32>
    %118 = math.exp %117 : vector<8x128xf32>
    %cst_33 = arith.constant 1.000000e+00 : f32
    %119 = vector.broadcast %cst_33 : f32 to vector<8x128xf32>
    %120 = arith.addf %119, %118 : vector<8x128xf32>
    %121 = arith.divf %119, %120 : vector<8x128xf32>
    %122 = vector.extract_strided_slice %121 {offsets = [0, 0], sizes = [8, 32], strides = [1, 1]} : vector<8x128xf32> to vector<8x32xf32>
    %123 = vector.extract_strided_slice %121 {offsets = [0, 32], sizes = [8, 32], strides = [1, 1]} : vector<8x128xf32> to vector<8x32xf32>
    %124 = vector.extract_strided_slice %121 {offsets = [0, 96], sizes = [8, 32], strides = [1, 1]} : vector<8x128xf32> to vector<8x32xf32>
    %125 = vector.extract_strided_slice %116 {offsets = [0, 64], sizes = [8, 32], strides = [1, 1]} : vector<8x128xf32> to vector<8x32xf32>
    %126 = math.tanh %125 : vector<8x32xf32>
    %127 = arith.mulf %123, %104 : vector<8x32xf32>
    %128 = arith.mulf %122, %126 : vector<8x32xf32>
    %129 = arith.addf %127, %128 : vector<8x32xf32>
    %130 = math.tanh %129 : vector<8x32xf32>
    %131 = arith.mulf %124, %130 : vector<8x32xf32>
    %132 = arith.truncf %131 : vector<8x32xf32> to vector<8x32xbf16>
    %133 = arith.index_cast %111 : i32 to index
    %c0_34 = arith.constant 0 : index
    %134 = vector.load %arg11[%133, %c0_34] : memref<64x32xbf16, #tpu.memory_space<vmem>>, vector<8x32xbf16>
    tpu.vector_store %arg11[%133, %c0_34], %132 {strides = array<i32>} : memref<64x32xbf16, #tpu.memory_space<vmem>>, vector<8x32xbf16>,
    %c5_i32 = arith.constant 5 : i32
    %c8_i32_35 = arith.constant 8 : i32
    %135 = arith.muli %c5_i32, %c8_i32_35 : i32
    %136 = tpu.assume_multiple %135, 8 : i32
    %137 = arith.index_cast %136 : i32 to index
    %c0_36 = arith.constant 0 : index
    %138 = vector.load %arg10[%137, %c0_36] : memref<64x128xf32, #tpu.memory_space<vmem>>, vector<8x128xf32>
    %139 = arith.truncf %131 : vector<8x32xf32> to vector<8x32xbf16>
    %cst_37 = arith.constant dense<0.000000e+00> : vector<8x128xf32>
    %140 = tpu.matmul %139, %7, %cst_37 {dimension_numbers = #tpu.dot_dimension_numbers<[1], [0], [0], [1], [0, 0, 1, 1], [], []>} : vector<8x32xbf16>, vector<32x128xbf16>, vector<8x128xf32> -> vector<8x128xf32>
    %141 = arith.addf %138, %140 : vector<8x128xf32>
    %142 = arith.negf %141 : vector<8x128xf32>
    %143 = math.exp %142 : vector<8x128xf32>
    %cst_38 = arith.constant 1.000000e+00 : f32
    %144 = vector.broadcast %cst_38 : f32 to vector<8x128xf32>
    %145 = arith.addf %144, %143 : vector<8x128xf32>
    %146 = arith.divf %144, %145 : vector<8x128xf32>
    %147 = vector.extract_strided_slice %146 {offsets = [0, 0], sizes = [8, 32], strides = [1, 1]} : vector<8x128xf32> to vector<8x32xf32>
    %148 = vector.extract_strided_slice %146 {offsets = [0, 32], sizes = [8, 32], strides = [1, 1]} : vector<8x128xf32> to vector<8x32xf32>
    %149 = vector.extract_strided_slice %146 {offsets = [0, 96], sizes = [8, 32], strides = [1, 1]} : vector<8x128xf32> to vector<8x32xf32>
    %150 = vector.extract_strided_slice %141 {offsets = [0, 64], sizes = [8, 32], strides = [1, 1]} : vector<8x128xf32> to vector<8x32xf32>
    %151 = math.tanh %150 : vector<8x32xf32>
    %152 = arith.mulf %148, %129 : vector<8x32xf32>
    %153 = arith.mulf %147, %151 : vector<8x32xf32>
    %154 = arith.addf %152, %153 : vector<8x32xf32>
    %155 = math.tanh %154 : vector<8x32xf32>
    %156 = arith.mulf %149, %155 : vector<8x32xf32>
    %157 = arith.truncf %156 : vector<8x32xf32> to vector<8x32xbf16>
    %158 = arith.index_cast %136 : i32 to index
    %c0_39 = arith.constant 0 : index
    %159 = vector.load %arg11[%158, %c0_39] : memref<64x32xbf16, #tpu.memory_space<vmem>>, vector<8x32xbf16>
    tpu.vector_store %arg11[%158, %c0_39], %157 {strides = array<i32>} : memref<64x32xbf16, #tpu.memory_space<vmem>>, vector<8x32xbf16>,
    %c6_i32 = arith.constant 6 : i32
    %c8_i32_40 = arith.constant 8 : i32
    %160 = arith.muli %c6_i32, %c8_i32_40 : i32
    %161 = tpu.assume_multiple %160, 8 : i32
    %162 = arith.index_cast %161 : i32 to index
    %c0_41 = arith.constant 0 : index
    %163 = vector.load %arg10[%162, %c0_41] : memref<64x128xf32, #tpu.memory_space<vmem>>, vector<8x128xf32>
    %164 = arith.truncf %156 : vector<8x32xf32> to vector<8x32xbf16>
    %cst_42 = arith.constant dense<0.000000e+00> : vector<8x128xf32>
    %165 = tpu.matmul %164, %7, %cst_42 {dimension_numbers = #tpu.dot_dimension_numbers<[1], [0], [0], [1], [0, 0, 1, 1], [], []>} : vector<8x32xbf16>, vector<32x128xbf16>, vector<8x128xf32> -> vector<8x128xf32>
    %166 = arith.addf %163, %165 : vector<8x128xf32>
    %167 = arith.negf %166 : vector<8x128xf32>
    %168 = math.exp %167 : vector<8x128xf32>
    %cst_43 = arith.constant 1.000000e+00 : f32
    %169 = vector.broadcast %cst_43 : f32 to vector<8x128xf32>
    %170 = arith.addf %169, %168 : vector<8x128xf32>
    %171 = arith.divf %169, %170 : vector<8x128xf32>
    %172 = vector.extract_strided_slice %171 {offsets = [0, 0], sizes = [8, 32], strides = [1, 1]} : vector<8x128xf32> to vector<8x32xf32>
    %173 = vector.extract_strided_slice %171 {offsets = [0, 32], sizes = [8, 32], strides = [1, 1]} : vector<8x128xf32> to vector<8x32xf32>
    %174 = vector.extract_strided_slice %171 {offsets = [0, 96], sizes = [8, 32], strides = [1, 1]} : vector<8x128xf32> to vector<8x32xf32>
    %175 = vector.extract_strided_slice %166 {offsets = [0, 64], sizes = [8, 32], strides = [1, 1]} : vector<8x128xf32> to vector<8x32xf32>
    %176 = math.tanh %175 : vector<8x32xf32>
    %177 = arith.mulf %173, %154 : vector<8x32xf32>
    %178 = arith.mulf %172, %176 : vector<8x32xf32>
    %179 = arith.addf %177, %178 : vector<8x32xf32>
    %180 = math.tanh %179 : vector<8x32xf32>
    %181 = arith.mulf %174, %180 : vector<8x32xf32>
    %182 = arith.truncf %181 : vector<8x32xf32> to vector<8x32xbf16>
    %183 = arith.index_cast %161 : i32 to index
    %c0_44 = arith.constant 0 : index
    %184 = vector.load %arg11[%183, %c0_44] : memref<64x32xbf16, #tpu.memory_space<vmem>>, vector<8x32xbf16>
    tpu.vector_store %arg11[%183, %c0_44], %182 {strides = array<i32>} : memref<64x32xbf16, #tpu.memory_space<vmem>>, vector<8x32xbf16>,
    %c7_i32 = arith.constant 7 : i32
    %c8_i32_45 = arith.constant 8 : i32
    %185 = arith.muli %c7_i32, %c8_i32_45 : i32
    %186 = tpu.assume_multiple %185, 8 : i32
    %187 = arith.index_cast %186 : i32 to index
    %c0_46 = arith.constant 0 : index
    %188 = vector.load %arg10[%187, %c0_46] : memref<64x128xf32, #tpu.memory_space<vmem>>, vector<8x128xf32>
    %189 = arith.truncf %181 : vector<8x32xf32> to vector<8x32xbf16>
    %cst_47 = arith.constant dense<0.000000e+00> : vector<8x128xf32>
    %190 = tpu.matmul %189, %7, %cst_47 {dimension_numbers = #tpu.dot_dimension_numbers<[1], [0], [0], [1], [0, 0, 1, 1], [], []>} : vector<8x32xbf16>, vector<32x128xbf16>, vector<8x128xf32> -> vector<8x128xf32>
    %191 = arith.addf %188, %190 : vector<8x128xf32>
    %192 = arith.negf %191 : vector<8x128xf32>
    %193 = math.exp %192 : vector<8x128xf32>
    %cst_48 = arith.constant 1.000000e+00 : f32
    %194 = vector.broadcast %cst_48 : f32 to vector<8x128xf32>
    %195 = arith.addf %194, %193 : vector<8x128xf32>
    %196 = arith.divf %194, %195 : vector<8x128xf32>
    %197 = vector.extract_strided_slice %196 {offsets = [0, 0], sizes = [8, 32], strides = [1, 1]} : vector<8x128xf32> to vector<8x32xf32>
    %198 = vector.extract_strided_slice %196 {offsets = [0, 32], sizes = [8, 32], strides = [1, 1]} : vector<8x128xf32> to vector<8x32xf32>
    %199 = vector.extract_strided_slice %196 {offsets = [0, 96], sizes = [8, 32], strides = [1, 1]} : vector<8x128xf32> to vector<8x32xf32>
    %200 = vector.extract_strided_slice %191 {offsets = [0, 64], sizes = [8, 32], strides = [1, 1]} : vector<8x128xf32> to vector<8x32xf32>
    %201 = math.tanh %200 : vector<8x32xf32>
    %202 = arith.mulf %198, %179 : vector<8x32xf32>
    %203 = arith.mulf %197, %201 : vector<8x32xf32>
    %204 = arith.addf %202, %203 : vector<8x32xf32>
    %205 = math.tanh %204 : vector<8x32xf32>
    %206 = arith.mulf %199, %205 : vector<8x32xf32>
    %207 = arith.truncf %206 : vector<8x32xf32> to vector<8x32xbf16>
    %208 = arith.index_cast %186 : i32 to index
    %c0_49 = arith.constant 0 : index
    %209 = vector.load %arg11[%208, %c0_49] : memref<64x32xbf16, #tpu.memory_space<vmem>>, vector<8x32xbf16>
    tpu.vector_store %arg11[%208, %c0_49], %207 {strides = array<i32>} : memref<64x32xbf16, #tpu.memory_space<vmem>>, vector<8x32xbf16>,
    %c8_i32_50 = arith.constant 8 : i32
    %c0_51 = arith.constant 0 : index
    %c0_52 = arith.constant 0 : index
    %210 = vector.load %arg11[%c0_51, %c0_52] : memref<64x32xbf16, #tpu.memory_space<vmem>>, vector<64x32xbf16>
    %c0_53 = arith.constant 0 : index
    %c0_54 = arith.constant 0 : index
    %211 = vector.load %arg4[%c0_53, %c0_54] : memref<32x128xbf16, #tpu.memory_space<vmem>>, vector<32x128xbf16>
    %cst_55 = arith.constant dense<0.000000e+00> : vector<64x128xf32>
    %212 = tpu.matmul %210, %211, %cst_55 {dimension_numbers = #tpu.dot_dimension_numbers<[1], [0], [0], [1], [0, 0, 1, 1], [], []>} : vector<64x32xbf16>, vector<32x128xbf16>, vector<64x128xf32> -> vector<64x128xf32>
    %c0_56 = arith.constant 0 : index
    %c0_57 = arith.constant 0 : index
    %213 = vector.load %arg6[%c0_56, %c0_57] : memref<1x128xf32, #tpu.memory_space<vmem>>, vector<1x128xf32>
    %214 = vector.broadcast %213 : vector<1x128xf32> to vector<64x128xf32>
    %215 = arith.addf %212, %214 : vector<64x128xf32>
    %c0_58 = arith.constant 0 : index
    %c0_59 = arith.constant 0 : index
    %216 = vector.load %arg10[%c0_58, %c0_59] : memref<64x128xf32, #tpu.memory_space<vmem>>, vector<64x128xf32>
    tpu.vector_store %arg10[%c0_58, %c0_59], %215 {strides = array<i32>} : memref<64x128xf32, #tpu.memory_space<vmem>>, vector<64x128xf32>,
    %c0_60 = arith.constant 0 : index
    %c0_61 = arith.constant 0 : index
    %217 = vector.load %arg5[%c0_60, %c0_61] : memref<32x128xbf16, #tpu.memory_space<vmem>>, vector<32x128xbf16>
    %cst_62 = arith.constant 0.000000e+00 : f32
    %218 = vector.broadcast %cst_62 : f32 to vector<8x32xf32>
    %cst_63 = arith.constant 0.000000e+00 : f32
    %219 = vector.broadcast %cst_63 : f32 to vector<8x32xf32>
    %c0_i32_64 = arith.constant 0 : i32
    %c8_i32_65 = arith.constant 8 : i32
    %220 = arith.muli %c0_i32_64, %c8_i32_65 : i32
    %221 = tpu.assume_multiple %220, 8 : i32
    %222 = arith.index_cast %221 : i32 to index
    %c0_66 = arith.constant 0 : index
    %223 = vector.load %arg10[%222, %c0_66] : memref<64x128xf32, #tpu.memory_space<vmem>>, vector<8x128xf32>
    %224 = arith.truncf %218 : vector<8x32xf32> to vector<8x32xbf16>
    %cst_67 = arith.constant dense<0.000000e+00> : vector<8x128xf32>
    %225 = tpu.matmul %224, %217, %cst_67 {dimension_numbers = #tpu.dot_dimension_numbers<[1], [0], [0], [1], [0, 0, 1, 1], [], []>} : vector<8x32xbf16>, vector<32x128xbf16>, vector<8x128xf32> -> vector<8x128xf32>
    %226 = arith.addf %223, %225 : vector<8x128xf32>
    %227 = arith.negf %226 : vector<8x128xf32>
    %228 = math.exp %227 : vector<8x128xf32>
    %cst_68 = arith.constant 1.000000e+00 : f32
    %229 = vector.broadcast %cst_68 : f32 to vector<8x128xf32>
    %230 = arith.addf %229, %228 : vector<8x128xf32>
    %231 = arith.divf %229, %230 : vector<8x128xf32>
    %232 = vector.extract_strided_slice %231 {offsets = [0, 0], sizes = [8, 32], strides = [1, 1]} : vector<8x128xf32> to vector<8x32xf32>
    %233 = vector.extract_strided_slice %231 {offsets = [0, 32], sizes = [8, 32], strides = [1, 1]} : vector<8x128xf32> to vector<8x32xf32>
    %234 = vector.extract_strided_slice %231 {offsets = [0, 96], sizes = [8, 32], strides = [1, 1]} : vector<8x128xf32> to vector<8x32xf32>
    %235 = vector.extract_strided_slice %226 {offsets = [0, 64], sizes = [8, 32], strides = [1, 1]} : vector<8x128xf32> to vector<8x32xf32>
    %236 = math.tanh %235 : vector<8x32xf32>
    %237 = arith.mulf %233, %219 : vector<8x32xf32>
    %238 = arith.mulf %232, %236 : vector<8x32xf32>
    %239 = arith.addf %237, %238 : vector<8x32xf32>
    %240 = math.tanh %239 : vector<8x32xf32>
    %241 = arith.mulf %234, %240 : vector<8x32xf32>
    %c1_i32_69 = arith.constant 1 : i32
    %c8_i32_70 = arith.constant 8 : i32
    %242 = arith.muli %c1_i32_69, %c8_i32_70 : i32
    %243 = tpu.assume_multiple %242, 8 : i32
    %244 = arith.index_cast %243 : i32 to index
    %c0_71 = arith.constant 0 : index
    %245 = vector.load %arg10[%244, %c0_71] : memref<64x128xf32, #tpu.memory_space<vmem>>, vector<8x128xf32>
    %246 = arith.truncf %241 : vector<8x32xf32> to vector<8x32xbf16>
    %cst_72 = arith.constant dense<0.000000e+00> : vector<8x128xf32>
    %247 = tpu.matmul %246, %217, %cst_72 {dimension_numbers = #tpu.dot_dimension_numbers<[1], [0], [0], [1], [0, 0, 1, 1], [], []>} : vector<8x32xbf16>, vector<32x128xbf16>, vector<8x128xf32> -> vector<8x128xf32>
    %248 = arith.addf %245, %247 : vector<8x128xf32>
    %249 = arith.negf %248 : vector<8x128xf32>
    %250 = math.exp %249 : vector<8x128xf32>
    %cst_73 = arith.constant 1.000000e+00 : f32
    %251 = vector.broadcast %cst_73 : f32 to vector<8x128xf32>
    %252 = arith.addf %251, %250 : vector<8x128xf32>
    %253 = arith.divf %251, %252 : vector<8x128xf32>
    %254 = vector.extract_strided_slice %253 {offsets = [0, 0], sizes = [8, 32], strides = [1, 1]} : vector<8x128xf32> to vector<8x32xf32>
    %255 = vector.extract_strided_slice %253 {offsets = [0, 32], sizes = [8, 32], strides = [1, 1]} : vector<8x128xf32> to vector<8x32xf32>
    %256 = vector.extract_strided_slice %253 {offsets = [0, 96], sizes = [8, 32], strides = [1, 1]} : vector<8x128xf32> to vector<8x32xf32>
    %257 = vector.extract_strided_slice %248 {offsets = [0, 64], sizes = [8, 32], strides = [1, 1]} : vector<8x128xf32> to vector<8x32xf32>
    %258 = math.tanh %257 : vector<8x32xf32>
    %259 = arith.mulf %255, %239 : vector<8x32xf32>
    %260 = arith.mulf %254, %258 : vector<8x32xf32>
    %261 = arith.addf %259, %260 : vector<8x32xf32>
    %262 = math.tanh %261 : vector<8x32xf32>
    %263 = arith.mulf %256, %262 : vector<8x32xf32>
    %c2_i32_74 = arith.constant 2 : i32
    %c8_i32_75 = arith.constant 8 : i32
    %264 = arith.muli %c2_i32_74, %c8_i32_75 : i32
    %265 = tpu.assume_multiple %264, 8 : i32
    %266 = arith.index_cast %265 : i32 to index
    %c0_76 = arith.constant 0 : index
    %267 = vector.load %arg10[%266, %c0_76] : memref<64x128xf32, #tpu.memory_space<vmem>>, vector<8x128xf32>
    %268 = arith.truncf %263 : vector<8x32xf32> to vector<8x32xbf16>
    %cst_77 = arith.constant dense<0.000000e+00> : vector<8x128xf32>
    %269 = tpu.matmul %268, %217, %cst_77 {dimension_numbers = #tpu.dot_dimension_numbers<[1], [0], [0], [1], [0, 0, 1, 1], [], []>} : vector<8x32xbf16>, vector<32x128xbf16>, vector<8x128xf32> -> vector<8x128xf32>
    %270 = arith.addf %267, %269 : vector<8x128xf32>
    %271 = arith.negf %270 : vector<8x128xf32>
    %272 = math.exp %271 : vector<8x128xf32>
    %cst_78 = arith.constant 1.000000e+00 : f32
    %273 = vector.broadcast %cst_78 : f32 to vector<8x128xf32>
    %274 = arith.addf %273, %272 : vector<8x128xf32>
    %275 = arith.divf %273, %274 : vector<8x128xf32>
    %276 = vector.extract_strided_slice %275 {offsets = [0, 0], sizes = [8, 32], strides = [1, 1]} : vector<8x128xf32> to vector<8x32xf32>
    %277 = vector.extract_strided_slice %275 {offsets = [0, 32], sizes = [8, 32], strides = [1, 1]} : vector<8x128xf32> to vector<8x32xf32>
    %278 = vector.extract_strided_slice %275 {offsets = [0, 96], sizes = [8, 32], strides = [1, 1]} : vector<8x128xf32> to vector<8x32xf32>
    %279 = vector.extract_strided_slice %270 {offsets = [0, 64], sizes = [8, 32], strides = [1, 1]} : vector<8x128xf32> to vector<8x32xf32>
    %280 = math.tanh %279 : vector<8x32xf32>
    %281 = arith.mulf %277, %261 : vector<8x32xf32>
    %282 = arith.mulf %276, %280 : vector<8x32xf32>
    %283 = arith.addf %281, %282 : vector<8x32xf32>
    %284 = math.tanh %283 : vector<8x32xf32>
    %285 = arith.mulf %278, %284 : vector<8x32xf32>
    %c3_i32_79 = arith.constant 3 : i32
    %c8_i32_80 = arith.constant 8 : i32
    %286 = arith.muli %c3_i32_79, %c8_i32_80 : i32
    %287 = tpu.assume_multiple %286, 8 : i32
    %288 = arith.index_cast %287 : i32 to index
    %c0_81 = arith.constant 0 : index
    %289 = vector.load %arg10[%288, %c0_81] : memref<64x128xf32, #tpu.memory_space<vmem>>, vector<8x128xf32>
    %290 = arith.truncf %285 : vector<8x32xf32> to vector<8x32xbf16>
    %cst_82 = arith.constant dense<0.000000e+00> : vector<8x128xf32>
    %291 = tpu.matmul %290, %217, %cst_82 {dimension_numbers = #tpu.dot_dimension_numbers<[1], [0], [0], [1], [0, 0, 1, 1], [], []>} : vector<8x32xbf16>, vector<32x128xbf16>, vector<8x128xf32> -> vector<8x128xf32>
    %292 = arith.addf %289, %291 : vector<8x128xf32>
    %293 = arith.negf %292 : vector<8x128xf32>
    %294 = math.exp %293 : vector<8x128xf32>
    %cst_83 = arith.constant 1.000000e+00 : f32
    %295 = vector.broadcast %cst_83 : f32 to vector<8x128xf32>
    %296 = arith.addf %295, %294 : vector<8x128xf32>
    %297 = arith.divf %295, %296 : vector<8x128xf32>
    %298 = vector.extract_strided_slice %297 {offsets = [0, 0], sizes = [8, 32], strides = [1, 1]} : vector<8x128xf32> to vector<8x32xf32>
    %299 = vector.extract_strided_slice %297 {offsets = [0, 32], sizes = [8, 32], strides = [1, 1]} : vector<8x128xf32> to vector<8x32xf32>
    %300 = vector.extract_strided_slice %297 {offsets = [0, 96], sizes = [8, 32], strides = [1, 1]} : vector<8x128xf32> to vector<8x32xf32>
    %301 = vector.extract_strided_slice %292 {offsets = [0, 64], sizes = [8, 32], strides = [1, 1]} : vector<8x128xf32> to vector<8x32xf32>
    %302 = math.tanh %301 : vector<8x32xf32>
    %303 = arith.mulf %299, %283 : vector<8x32xf32>
    %304 = arith.mulf %298, %302 : vector<8x32xf32>
    %305 = arith.addf %303, %304 : vector<8x32xf32>
    %306 = math.tanh %305 : vector<8x32xf32>
    %307 = arith.mulf %300, %306 : vector<8x32xf32>
    %c4_i32_84 = arith.constant 4 : i32
    %c8_i32_85 = arith.constant 8 : i32
    %308 = arith.muli %c4_i32_84, %c8_i32_85 : i32
    %309 = tpu.assume_multiple %308, 8 : i32
    %310 = arith.index_cast %309 : i32 to index
    %c0_86 = arith.constant 0 : index
    %311 = vector.load %arg10[%310, %c0_86] : memref<64x128xf32, #tpu.memory_space<vmem>>, vector<8x128xf32>
    %312 = arith.truncf %307 : vector<8x32xf32> to vector<8x32xbf16>
    %cst_87 = arith.constant dense<0.000000e+00> : vector<8x128xf32>
    %313 = tpu.matmul %312, %217, %cst_87 {dimension_numbers = #tpu.dot_dimension_numbers<[1], [0], [0], [1], [0, 0, 1, 1], [], []>} : vector<8x32xbf16>, vector<32x128xbf16>, vector<8x128xf32> -> vector<8x128xf32>
    %314 = arith.addf %311, %313 : vector<8x128xf32>
    %315 = arith.negf %314 : vector<8x128xf32>
    %316 = math.exp %315 : vector<8x128xf32>
    %cst_88 = arith.constant 1.000000e+00 : f32
    %317 = vector.broadcast %cst_88 : f32 to vector<8x128xf32>
    %318 = arith.addf %317, %316 : vector<8x128xf32>
    %319 = arith.divf %317, %318 : vector<8x128xf32>
    %320 = vector.extract_strided_slice %319 {offsets = [0, 0], sizes = [8, 32], strides = [1, 1]} : vector<8x128xf32> to vector<8x32xf32>
    %321 = vector.extract_strided_slice %319 {offsets = [0, 32], sizes = [8, 32], strides = [1, 1]} : vector<8x128xf32> to vector<8x32xf32>
    %322 = vector.extract_strided_slice %319 {offsets = [0, 96], sizes = [8, 32], strides = [1, 1]} : vector<8x128xf32> to vector<8x32xf32>
    %323 = vector.extract_strided_slice %314 {offsets = [0, 64], sizes = [8, 32], strides = [1, 1]} : vector<8x128xf32> to vector<8x32xf32>
    %324 = math.tanh %323 : vector<8x32xf32>
    %325 = arith.mulf %321, %305 : vector<8x32xf32>
    %326 = arith.mulf %320, %324 : vector<8x32xf32>
    %327 = arith.addf %325, %326 : vector<8x32xf32>
    %328 = math.tanh %327 : vector<8x32xf32>
    %329 = arith.mulf %322, %328 : vector<8x32xf32>
    %c5_i32_89 = arith.constant 5 : i32
    %c8_i32_90 = arith.constant 8 : i32
    %330 = arith.muli %c5_i32_89, %c8_i32_90 : i32
    %331 = tpu.assume_multiple %330, 8 : i32
    %332 = arith.index_cast %331 : i32 to index
    %c0_91 = arith.constant 0 : index
    %333 = vector.load %arg10[%332, %c0_91] : memref<64x128xf32, #tpu.memory_space<vmem>>, vector<8x128xf32>
    %334 = arith.truncf %329 : vector<8x32xf32> to vector<8x32xbf16>
    %cst_92 = arith.constant dense<0.000000e+00> : vector<8x128xf32>
    %335 = tpu.matmul %334, %217, %cst_92 {dimension_numbers = #tpu.dot_dimension_numbers<[1], [0], [0], [1], [0, 0, 1, 1], [], []>} : vector<8x32xbf16>, vector<32x128xbf16>, vector<8x128xf32> -> vector<8x128xf32>
    %336 = arith.addf %333, %335 : vector<8x128xf32>
    %337 = arith.negf %336 : vector<8x128xf32>
    %338 = math.exp %337 : vector<8x128xf32>
    %cst_93 = arith.constant 1.000000e+00 : f32
    %339 = vector.broadcast %cst_93 : f32 to vector<8x128xf32>
    %340 = arith.addf %339, %338 : vector<8x128xf32>
    %341 = arith.divf %339, %340 : vector<8x128xf32>
    %342 = vector.extract_strided_slice %341 {offsets = [0, 0], sizes = [8, 32], strides = [1, 1]} : vector<8x128xf32> to vector<8x32xf32>
    %343 = vector.extract_strided_slice %341 {offsets = [0, 32], sizes = [8, 32], strides = [1, 1]} : vector<8x128xf32> to vector<8x32xf32>
    %344 = vector.extract_strided_slice %341 {offsets = [0, 96], sizes = [8, 32], strides = [1, 1]} : vector<8x128xf32> to vector<8x32xf32>
    %345 = vector.extract_strided_slice %336 {offsets = [0, 64], sizes = [8, 32], strides = [1, 1]} : vector<8x128xf32> to vector<8x32xf32>
    %346 = math.tanh %345 : vector<8x32xf32>
    %347 = arith.mulf %343, %327 : vector<8x32xf32>
    %348 = arith.mulf %342, %346 : vector<8x32xf32>
    %349 = arith.addf %347, %348 : vector<8x32xf32>
    %350 = math.tanh %349 : vector<8x32xf32>
    %351 = arith.mulf %344, %350 : vector<8x32xf32>
    %c6_i32_94 = arith.constant 6 : i32
    %c8_i32_95 = arith.constant 8 : i32
    %352 = arith.muli %c6_i32_94, %c8_i32_95 : i32
    %353 = tpu.assume_multiple %352, 8 : i32
    %354 = arith.index_cast %353 : i32 to index
    %c0_96 = arith.constant 0 : index
    %355 = vector.load %arg10[%354, %c0_96] : memref<64x128xf32, #tpu.memory_space<vmem>>, vector<8x128xf32>
    %356 = arith.truncf %351 : vector<8x32xf32> to vector<8x32xbf16>
    %cst_97 = arith.constant dense<0.000000e+00> : vector<8x128xf32>
    %357 = tpu.matmul %356, %217, %cst_97 {dimension_numbers = #tpu.dot_dimension_numbers<[1], [0], [0], [1], [0, 0, 1, 1], [], []>} : vector<8x32xbf16>, vector<32x128xbf16>, vector<8x128xf32> -> vector<8x128xf32>
    %358 = arith.addf %355, %357 : vector<8x128xf32>
    %359 = arith.negf %358 : vector<8x128xf32>
    %360 = math.exp %359 : vector<8x128xf32>
    %cst_98 = arith.constant 1.000000e+00 : f32
    %361 = vector.broadcast %cst_98 : f32 to vector<8x128xf32>
    %362 = arith.addf %361, %360 : vector<8x128xf32>
    %363 = arith.divf %361, %362 : vector<8x128xf32>
    %364 = vector.extract_strided_slice %363 {offsets = [0, 0], sizes = [8, 32], strides = [1, 1]} : vector<8x128xf32> to vector<8x32xf32>
    %365 = vector.extract_strided_slice %363 {offsets = [0, 32], sizes = [8, 32], strides = [1, 1]} : vector<8x128xf32> to vector<8x32xf32>
    %366 = vector.extract_strided_slice %363 {offsets = [0, 96], sizes = [8, 32], strides = [1, 1]} : vector<8x128xf32> to vector<8x32xf32>
    %367 = vector.extract_strided_slice %358 {offsets = [0, 64], sizes = [8, 32], strides = [1, 1]} : vector<8x128xf32> to vector<8x32xf32>
    %368 = math.tanh %367 : vector<8x32xf32>
    %369 = arith.mulf %365, %349 : vector<8x32xf32>
    %370 = arith.mulf %364, %368 : vector<8x32xf32>
    %371 = arith.addf %369, %370 : vector<8x32xf32>
    %372 = math.tanh %371 : vector<8x32xf32>
    %373 = arith.mulf %366, %372 : vector<8x32xf32>
    %c7_i32_99 = arith.constant 7 : i32
    %c8_i32_100 = arith.constant 8 : i32
    %374 = arith.muli %c7_i32_99, %c8_i32_100 : i32
    %375 = tpu.assume_multiple %374, 8 : i32
    %376 = arith.index_cast %375 : i32 to index
    %c0_101 = arith.constant 0 : index
    %377 = vector.load %arg10[%376, %c0_101] : memref<64x128xf32, #tpu.memory_space<vmem>>, vector<8x128xf32>
    %378 = arith.truncf %373 : vector<8x32xf32> to vector<8x32xbf16>
    %cst_102 = arith.constant dense<0.000000e+00> : vector<8x128xf32>
    %379 = tpu.matmul %378, %217, %cst_102 {dimension_numbers = #tpu.dot_dimension_numbers<[1], [0], [0], [1], [0, 0, 1, 1], [], []>} : vector<8x32xbf16>, vector<32x128xbf16>, vector<8x128xf32> -> vector<8x128xf32>
    %380 = arith.addf %377, %379 : vector<8x128xf32>
    %381 = arith.negf %380 : vector<8x128xf32>
    %382 = math.exp %381 : vector<8x128xf32>
    %cst_103 = arith.constant 1.000000e+00 : f32
    %383 = vector.broadcast %cst_103 : f32 to vector<8x128xf32>
    %384 = arith.addf %383, %382 : vector<8x128xf32>
    %385 = arith.divf %383, %384 : vector<8x128xf32>
    %386 = vector.extract_strided_slice %385 {offsets = [0, 0], sizes = [8, 32], strides = [1, 1]} : vector<8x128xf32> to vector<8x32xf32>
    %387 = vector.extract_strided_slice %385 {offsets = [0, 32], sizes = [8, 32], strides = [1, 1]} : vector<8x128xf32> to vector<8x32xf32>
    %388 = vector.extract_strided_slice %385 {offsets = [0, 96], sizes = [8, 32], strides = [1, 1]} : vector<8x128xf32> to vector<8x32xf32>
    %389 = vector.extract_strided_slice %380 {offsets = [0, 64], sizes = [8, 32], strides = [1, 1]} : vector<8x128xf32> to vector<8x32xf32>
    %390 = math.tanh %389 : vector<8x32xf32>
    %391 = arith.mulf %387, %371 : vector<8x32xf32>
    %392 = arith.mulf %386, %390 : vector<8x32xf32>
    %393 = arith.addf %391, %392 : vector<8x32xf32>
    %394 = math.tanh %393 : vector<8x32xf32>
    %395 = arith.mulf %388, %394 : vector<8x32xf32>
    %c8_i32_104 = arith.constant 8 : i32
    %396 = arith.truncf %395 : vector<8x32xf32> to vector<8x32xbf16>
    %c0_105 = arith.constant 0 : index
    %c0_106 = arith.constant 0 : index
    %397 = vector.load %arg7[%c0_105, %c0_106] : memref<32x4xbf16, #tpu.memory_space<vmem>>, vector<32x4xbf16>
    %cst_107 = arith.constant dense<0.000000e+00> : vector<8x4xf32>
    %398 = tpu.matmul %396, %397, %cst_107 {dimension_numbers = #tpu.dot_dimension_numbers<[1], [0], [0], [1], [0, 0, 1, 1], [], []>} : vector<8x32xbf16>, vector<32x4xbf16>, vector<8x4xf32> -> vector<8x4xf32>
    %c0_108 = arith.constant 0 : index
    %c0_109 = arith.constant 0 : index
    %399 = vector.load %arg8[%c0_108, %c0_109] : memref<1x4xf32, #tpu.memory_space<vmem>>, vector<1x4xf32>
    %400 = vector.broadcast %399 : vector<1x4xf32> to vector<8x4xf32>
    %401 = arith.addf %398, %400 : vector<8x4xf32>
    %c0_110 = arith.constant 0 : index
    %c0_111 = arith.constant 0 : index
    %402 = vector.load %arg9[%c0_110, %c0_111] : memref<8x4xf32, #tpu.memory_space<vmem>>, vector<8x4xf32>
    tpu.vector_store %arg9[%c0_110, %c0_111], %401 {strides = array<i32>} : memref<8x4xf32, #tpu.memory_space<vmem>>, vector<8x4xf32>,
    return
  }
}

</mosaic_0001>

<llo_original>
// kernel: sentiment_lstm_forward.1
$region0: #{sentiment_lstm_forward.1}
  #allocation0 [shape = 'u32[]', space=smem, size = 0x4, offset = 0x4, fixed_abs, tag = 'smem constant byte address 0x4 - core index']
  #allocation1 [shape = 'u32[144,128]{1,0:T(1,128)}', space=vmem, size = 0x12000, scoped, tag = 'internal scratch']
  #allocation2 [shape = 'f32[64,128]{1,0:T(8,128)}', space=vmem, size = 0x8000, scoped, tag = 'scratch operand']
  #allocation3 [shape = 'bf16[64,32]{1,0:T(8,128)(2,1)}', space=vmem, size = 0x4000, scoped, tag = 'scratch operand']
  #allocation4 [shape = 'bf16[64,32]{1,0:T(8,128)(2,1)}', space=vmem, size = 0x4000, scoped, tag = 'scratch operand']
  %s0 = inlined_call_operand.vmem [shape: bf16[64,16], index: 0, kind: input, shape index: {}]
  %s1 = inlined_call_operand.vmem [shape: bf16[16,128], index: 1, kind: input, shape index: {}]
  %s2 = inlined_call_operand.vmem [shape: bf16[32,128], index: 2, kind: input, shape index: {}]
  %s3 = inlined_call_operand.vmem [shape: f32[1,128], index: 3, kind: input, shape index: {}]
  %s4 = inlined_call_operand.vmem [shape: bf16[32,128], index: 4, kind: input, shape index: {}]
  %s5 = inlined_call_operand.vmem [shape: bf16[32,128], index: 5, kind: input, shape index: {}]
  %s6 = inlined_call_operand.vmem [shape: f32[1,128], index: 6, kind: input, shape index: {}]
  %s7 = inlined_call_operand.vmem [shape: bf16[32,4], index: 7, kind: input, shape index: {}]
  %s8 = inlined_call_operand.vmem [shape: f32[1,4], index: 8, kind: input, shape index: {}]
  %s9 = inlined_call_operand.vmem [shape: f32[8,4], index: 9, kind: output, shape index: {}]
  %s10 = sld [smem:[#allocation0]]
  $region46: #{sentiment_lstm_forward.1} parent=0
    _
  %s12 = ssub.s32 1, %s10
  %s13 = scalar_select 0, %s12, %s10
  // Predicated region
  $region2: #{sentiment_lstm_forward.1} parent=0 // pred_check
    _
  $region3: #{sentiment_lstm_forward.1} parent=0 // pred_check_branch
    %15 = sbr.rel (0) target = $region5
  $region4: #{sentiment_lstm_forward.1} parent=0 // pred_region
    _
  $region5: #{sentiment_lstm_forward.1} parent=0 // pred_fallthru
    _
  // Predicated region
  $region6: #{sentiment_lstm_forward.1} parent=0 // pred_check
    _
  $region7: #{sentiment_lstm_forward.1} parent=0 // pred_check_branch
    %17 = sbr.rel (0) target = $region9
  $region8: #{sentiment_lstm_forward.1} parent=0 // pred_region
    _
  $region9: #{sentiment_lstm_forward.1} parent=0 // pred_fallthru
    _
  // Predicated region
  $region10: #{sentiment_lstm_forward.1} parent=0 // pred_check
    _
  $region11: #{sentiment_lstm_forward.1} parent=0 // pred_check_branch
    %19 = sbr.rel (0) target = $region13
  $region12: #{sentiment_lstm_forward.1} parent=0 // pred_region
    _
  $region13: #{sentiment_lstm_forward.1} parent=0 // pred_fallthru
    _
  // Predicated region
  $region14: #{sentiment_lstm_forward.1} parent=0 // pred_check
    _
  $region15: #{sentiment_lstm_forward.1} parent=0 // pred_check_branch
    %21 = sbr.rel (0) target = $region17
  $region16: #{sentiment_lstm_forward.1} parent=0 // pred_region
    _
  $region17: #{sentiment_lstm_forward.1} parent=0 // pred_fallthru
    _
  // Predicated region
  $region18: #{sentiment_lstm_forward.1} parent=0 // pred_check
    _
  $region19: #{sentiment_lstm_forward.1} parent=0 // pred_check_branch
    %23 = sbr.rel (0) target = $region21
  $region20: #{sentiment_lstm_forward.1} parent=0 // pred_region
    _
  $region21: #{sentiment_lstm_forward.1} parent=0 // pred_fallthru
    _
  // Predicated region
  $region22: #{sentiment_lstm_forward.1} parent=0 // pred_check
    _
  $region23: #{sentiment_lstm_forward.1} parent=0 // pred_check_branch
    %25 = sbr.rel (0) target = $region25
  $region24: #{sentiment_lstm_forward.1} parent=0 // pred_region
    _
  $region25: #{sentiment_lstm_forward.1} parent=0 // pred_fallthru
    _
  // Predicated region
  $region26: #{sentiment_lstm_forward.1} parent=0 // pred_check
    _
  $region27: #{sentiment_lstm_forward.1} parent=0 // pred_check_branch
    %27 = sbr.rel (0) target = $region29
  $region28: #{sentiment_lstm_forward.1} parent=0 // pred_region
    _
  $region29: #{sentiment_lstm_forward.1} parent=0 // pred_fallthru
    _
  // Predicated region
  $region30: #{sentiment_lstm_forward.1} parent=0 // pred_check
    _
  $region31: #{sentiment_lstm_forward.1} parent=0 // pred_check_branch
    %29 = sbr.rel (0) target = $region33
  $region32: #{sentiment_lstm_forward.1} parent=0 // pred_region
    _
  $region33: #{sentiment_lstm_forward.1} parent=0 // pred_fallthru
    _
  // Predicated region
  $region34: #{sentiment_lstm_forward.1} parent=0 // pred_check
    _
  $region35: #{sentiment_lstm_forward.1} parent=0 // pred_check_branch
    %31 = sbr.rel (0) target = $region37
  $region36: #{sentiment_lstm_forward.1} parent=0 // pred_region
    _
  $region37: #{sentiment_lstm_forward.1} parent=0 // pred_fallthru
    _
  %v33 = vld [vmem:[%s0] sm:$0xf]
  %v34 = vld [vmem:[%s0 + $0x4] sm:$0xf]
  %v35 = vld [vmem:[%s0 + $0x8] sm:$0xf]
  %v36 = vld [vmem:[%s0 + $0xc] sm:$0xf]
  %v37 = vld [vmem:[%s0 + $0x10] sm:$0xf]
  %v38 = vld [vmem:[%s0 + $0x14] sm:$0xf]
  %v39 = vld [vmem:[%s0 + $0x18] sm:$0xf]
  %v40 = vld [vmem:[%s0 + $0x1c] sm:$0xf]
  %v41 = vld [vmem:[%s1] sm:$0xf]
  %v42 = vld [vmem:[%s1 + $0x4] sm:$0xf]
  %v43 = vld [vmem:[%s3] sm:$0x1]
  %v45 = vlaneseq
  %v46 = vshrl.u32 %v45, 7
  %v47 = vsub.s32 0, %v46
  %v48 = vrot.slane %v43, %v47
  %v58 = vunpack.c.l.b16 %v33
  %v59 = vunpack.c.l.b16 %v34
  %v60 = vunpack.c.l.b16 %v35
  %v61 = vunpack.c.l.b16 %v36
  %v62 = vunpack.c.l.b16 %v37
  %v63 = vunpack.c.l.b16 %v38
  %v64 = vunpack.c.l.b16 %v39
  %v65 = vunpack.c.l.b16 %v40
  %v66 = vpack.c.b16 %v59, %v58
  %v67 = vpack.c.b16 %v61, %v60
  %v68 = vpack.c.b16 %v63, %v62
  %v69 = vpack.c.b16 %v65, %v64
  %v72 = vunpack.c.l.b16 %v41
  %v73 = vunpack.c.l.b16 %v42
  %v74 = vpack.c.b16 %v73, %v72
  %vm76 = vcmask 130048
  %v78 = vsel %vm76, %v66, 0
  %v81 = vsel %vm76, %v67, 0
  %v84 = vsel %vm76, %v68, 0
  %v87 = vsel %vm76, %v69, 0
  %89 = vmatprep.subr.bf16.mxu0 0
  %90 = vmatpush1.bf16.msra.mxu0 0
  %91 = vmatprep.subr.bf16.mxu0 0
  %92 = vmatpush1.bf16.msra.mxu0 0
  %93 = vmatprep.subr.bf16.mxu0 0
  %94 = vmatpush1.bf16.msra.mxu0 0
  %95 = vmatprep.subr.bf16.mxu0 0
  %96 = vmatpush1.bf16.msra.mxu0 0
  %97 = vmatprep.subr.bf16.mxu0 0
  %98 = vmatpush1.bf16.msra.mxu0 0
  %99 = vmatprep.subr.bf16.mxu0 0
  %100 = vmatpush1.bf16.msra.mxu0 0
  %101 = vmatprep.subr.bf16.mxu0 0
  %102 = vmatpush1.bf16.msra.mxu0 0
  %103 = vmatprep.subr.bf16.mxu0 0
  %104 = vmatpush1.bf16.msra.mxu0 %v74
  %105 = vmatprep.subr.bf16.mxu0 0
  %106 = vmatpush2.bf16.msra.mxu0 0
  %107 = vmatprep.subr.bf16.mxu0 0
  %108 = vmatpush2.bf16.msra.mxu0 0
  %109 = vmatprep.subr.bf16.mxu0 0
  %110 = vmatpush2.bf16.msra.mxu0 0
  %111 = vmatprep.subr.bf16.mxu0 0
  %112 = vmatpush2.bf16.msra.mxu0 0
  %113 = vmatprep.subr.bf16.mxu0 0
  %114 = vmatpush2.bf16.msra.mxu0 0
  %115 = vmatprep.subr.bf16.mxu0 0
  %116 = vmatpush2.bf16.msra.mxu0 0
  %117 = vmatprep.subr.bf16.mxu0 0
  %118 = vmatpush2.bf16.msra.mxu0 0
  %119 = vmatprep.subr.bf16.mxu0 0
  %120 = vmatpush2.bf16.msra.mxu0 0
  %121 = vmatprep.mubr.bf16.mxu0 0
  %122 = vmatmul.mubr.bf16.gmra.mxu0 %v78
  %v123 = vpop.f32.mrf.mxu0
  %v124 = vadd.f32 %v48, %v123
  %v125 = vpop.f32.mrf.mxu0
  %v126 = vpop.f32.mrf.mxu0
  %v127 = vadd.f32 %v48, %v126
  %v128 = vpop.f32.mrf.mxu0
  %129 = vmatprep.mubr.bf16.mxu0 0
  %130 = vmatmul.mubr.bf16.gmra.mxu0 %v81
  %v131 = vpop.f32.mrf.mxu0
  %v132 = vadd.f32 %v48, %v131
  %v133 = vpop.f32.mrf.mxu0
  %v134 = vpop.f32.mrf.mxu0
  %v135 = vadd.f32 %v48, %v134
  %v136 = vpop.f32.mrf.mxu0
  %137 = vmatprep.mubr.bf16.mxu0 0
  %138 = vmatmul.mubr.bf16.gmra.mxu0 %v84
  %v139 = vpop.f32.mrf.mxu0
  %v140 = vadd.f32 %v48, %v139
  %v141 = vpop.f32.mrf.mxu0
  %v142 = vpop.f32.mrf.mxu0
  %v143 = vadd.f32 %v48, %v142
  %v144 = vpop.f32.mrf.mxu0
  %145 = vmatprep.mubr.bf16.mxu0 0
  %146 = vmatmul.mubr.bf16.gmra.mxu0 %v87
  %v147 = vpop.f32.mrf.mxu0
  %v148 = vadd.f32 %v48, %v147
  %v149 = vpop.f32.mrf.mxu0
  %v150 = vpop.f32.mrf.mxu0
  %v151 = vadd.f32 %v48, %v150
  %v152 = vpop.f32.mrf.mxu0
  %153 = vdwg.mxu0
  %154 = vst [vmem:[#allocation2] sm:$0xff] %v124
  %155 = vst [vmem:[#allocation2 + $0x8] sm:$0xff] %v127
  %156 = vst [vmem:[#allocation2 + $0x10] sm:$0xff] %v132
  %157 = vst [vmem:[#allocation2 + $0x18] sm:$0xff] %v135
  %158 = vst [vmem:[#allocation2 + $0x20] sm:$0xff] %v140
  %159 = vst [vmem:[#allocation2 + $0x28] sm:$0xff] %v143
  %160 = vst [vmem:[#allocation2 + $0x30] sm:$0xff] %v148
  %161 = vst [vmem:[#allocation2 + $0x38] sm:$0xff] %v151
  %v162 = vld [vmem:[%s2] sm:$0xf]
  %v163 = vld [vmem:[%s2 + $0x4] sm:$0xf]
  %v164 = vld [vmem:[%s2 + $0x8] sm:$0xf]
  %v165 = vld [vmem:[%s2 + $0xc] sm:$0xf]
  %v166 = vld [vmem:[#allocation2] sm:$0xff]
  %v171 = vunpack.c.l.b16 %v162
  %v172 = vunpack.c.l.b16 %v163
  %v173 = vunpack.c.l.b16 %v164
  %v174 = vunpack.c.l.b16 %v165
  %v175 = vpack.c.b16 %v172, %v171
  %v176 = vpack.c.b16 %v174, %v173
  %vm179 = vcmask 261120
  %v181 = vsel %vm179, 0, 0
  %183 = vmatprep.subr.bf16.mxu0 0
  %184 = vmatpush1.bf16.msra.mxu0 0
  %185 = vmatprep.subr.bf16.mxu0 0
  %186 = vmatpush1.bf16.msra.mxu0 0
  %187 = vmatprep.subr.bf16.mxu0 0
  %188 = vmatpush1.bf16.msra.mxu0 0
  %189 = vmatprep.subr.bf16.mxu0 0
  %190 = vmatpush1.bf16.msra.mxu0 0
  %191 = vmatprep.subr.bf16.mxu0 0
  %192 = vmatpush1.bf16.msra.mxu0 0
  %193 = vmatprep.subr.bf16.mxu0 0
  %194 = vmatpush1.bf16.msra.mxu0 0
  %195 = vmatprep.subr.bf16.mxu0 0
  %196 = vmatpush1.bf16.msra.mxu0 %v176
  %197 = vmatprep.subr.bf16.mxu0 0
  %198 = vmatpush1.bf16.msra.mxu0 %v175
  %199 = vmatprep.subr.bf16.mxu0 0
  %200 = vmatpush2.bf16.msra.mxu0 0
  %201 = vmatprep.subr.bf16.mxu0 0
  %202 = vmatpush2.bf16.msra.mxu0 0
  %203 = vmatprep.subr.bf16.mxu0 0
  %204 = vmatpush2.bf16.msra.mxu0 0
  %205 = vmatprep.subr.bf16.mxu0 0
  %206 = vmatpush2.bf16.msra.mxu0 0
  %207 = vmatprep.subr.bf16.mxu0 0
  %208 = vmatpush2.bf16.msra.mxu0 0
  %209 = vmatprep.subr.bf16.mxu0 0
  %210 = vmatpush2.bf16.msra.mxu0 0
  %211 = vmatprep.subr.bf16.mxu0 0
  %212 = vmatpush2.bf16.msra.mxu0 0
  %213 = vmatprep.subr.bf16.mxu0 0
  %214 = vmatpush2.bf16.msra.mxu0 0
  %215 = vmatprep.mubr.bf16.mxu0 0
  %216 = vmatmul.mubr.bf16.gmra.mxu0 %v181
  %v217 = vpop.f32.mrf.mxu0
  %v218 = vadd.f32 0.0, %v217
  %v219 = vpop.f32.mrf.mxu0
  %v220 = vpop.f32.mrf.mxu0
  %v221 = vpop.f32.mrf.mxu0
  %222 = vdwg.mxu0
  %v223 = vadd.f32 %v166, %v218
  %v224 = vxor.u32 %v223, 2147483648
  %v225 = vmul.f32 %v224, 1.442695
  %v226 = vpow.pop %v225
  %v227 = vadd.f32 %v226, 1.0
  %v228 = vrcp.pop %v227
  %v229 = vmul.f32 1.0, %v228
  %v230 = vtanh.pop %v223
  %v231 = vmul.f32 %v229, 0.0
  %233 = vrot.lane.b32.xlu0 %v230, 64
  %v234 = vpop.permute.xlu0 %233
  %v236 = vmul.f32 %v229, %v234
  %238 = vrot.lane.b32.xlu0 %v236, 32
  %v239 = vpop.permute.xlu0 %238
  %v241 = vadd.f32 %v231, %v239
  %v242 = vtanh.pop %v241
  %244 = vrot.lane.b32.xlu0 %v242, 64
  %v245 = vpop.permute.xlu0 %244
  %v247 = vmul.f32 %v229, %v245
  %v248 = vpack.c.bf16 %v247, %v247
  %v250 = vunpack.c.l.b16 %v248
  %v251 = vpack.c.b16 %v250, %v250
  %252 = vrot.lane.b32.xlu0 %v251, 32
  %v253 = vpop.permute.xlu0 %252
  %vm255 = vcmask 257024
  %256 = vst.msk [vmem:[#allocation3] sm:$0xf] %vm255, %v253
  %s257 = scalar_lea.vmem [#allocation2], 8
  %v258 = vld [vmem:[%s257] sm:$0xff]
  %259 = vrot.lane.b32.xlu0 %v248, 32
  %v260 = vpop.permute.xlu0 %259
  %v262 = vsel %vm179, %v260, 0
  %264 = vmatprep.subr.bf16.mxu0 0
  %265 = vmatpush1.bf16.msra.mxu0 0
  %266 = vmatprep.subr.bf16.mxu0 0
  %267 = vmatpush1.bf16.msra.mxu0 0
  %268 = vmatprep.subr.bf16.mxu0 0
  %269 = vmatpush1.bf16.msra.mxu0 0
  %270 = vmatprep.subr.bf16.mxu0 0
  %271 = vmatpush1.bf16.msra.mxu0 0
  %272 = vmatprep.subr.bf16.mxu0 0
  %273 = vmatpush1.bf16.msra.mxu0 0
  %274 = vmatprep.subr.bf16.mxu0 0
  %275 = vmatpush1.bf16.msra.mxu0 0
  %276 = vmatprep.subr.bf16.mxu0 0
  %277 = vmatpush1.bf16.msra.mxu0 %v176
  %278 = vmatprep.subr.bf16.mxu0 0
  %279 = vmatpush1.bf16.msra.mxu0 %v175
  %280 = vmatprep.subr.bf16.mxu0 0
  %281 = vmatpush2.bf16.msra.mxu0 0
  %282 = vmatprep.subr.bf16.mxu0 0
  %283 = vmatpush2.bf16.msra.mxu0 0
  %284 = vmatprep.subr.bf16.mxu0 0
  %285 = vmatpush2.bf16.msra.mxu0 0
  %286 = vmatprep.subr.bf16.mxu0 0
  %287 = vmatpush2.bf16.msra.mxu0 0
  %288 = vmatprep.subr.bf16.mxu0 0
  %289 = vmatpush2.bf16.msra.mxu0 0
  %290 = vmatprep.subr.bf16.mxu0 0
  %291 = vmatpush2.bf16.msra.mxu0 0
  %292 = vmatprep.subr.bf16.mxu0 0
  %293 = vmatpush2.bf16.msra.mxu0 0
  %294 = vmatprep.subr.bf16.mxu0 0
  %295 = vmatpush2.bf16.msra.mxu0 0
  %296 = vmatprep.mubr.bf16.mxu0 0
  %297 = vmatmul.mubr.bf16.gmra.mxu0 %v262
  %v298 = vpop.f32.mrf.mxu0
  %v299 = vadd.f32 0.0, %v298
  %v300 = vpop.f32.mrf.mxu0
  %v301 = vpop.f32.mrf.mxu0
  %v302 = vpop.f32.mrf.mxu0
  %303 = vdwg.mxu0
  %v304 = vadd.f32 %v258, %v299
  %v305 = vxor.u32 %v304, 2147483648
  %v306 = vmul.f32 %v305, 1.442695
  %v307 = vpow.pop %v306
  %v308 = vadd.f32 %v307, 1.0
  %v309 = vrcp.pop %v308
  %v310 = vmul.f32 1.0, %v309
  %v311 = vtanh.pop %v304
  %v312 = vmul.f32 %v310, %v241
  %314 = vrot.lane.b32.xlu0 %v311, 64
  %v315 = vpop.permute.xlu0 %314
  %v317 = vmul.f32 %v310, %v315
  %319 = vrot.lane.b32.xlu0 %v317, 32
  %v320 = vpop.permute.xlu0 %319
  %v322 = vadd.f32 %v312, %v320
  %v323 = vtanh.pop %v322
  %325 = vrot.lane.b32.xlu0 %v323, 64
  %v326 = vpop.permute.xlu0 %325
  %v328 = vmul.f32 %v310, %v326
  %v329 = vpack.c.bf16 %v328, %v328
  %v331 = vunpack.c.l.b16 %v329
  %v332 = vpack.c.b16 %v331, %v331
  %333 = vrot.lane.b32.xlu0 %v332, 32
  %v334 = vpop.permute.xlu0 %333
  %s336 = scalar_lea.vmem [#allocation3], 4
  %337 = vst.msk [vmem:[%s336] sm:$0xf] %vm255, %v334
  %s338 = scalar_lea.vmem [#allocation2], 16
  %v339 = vld [vmem:[%s338] sm:$0xff]
  %340 = vrot.lane.b32.xlu0 %v329, 32
  %v341 = vpop.permute.xlu0 %340
  %v343 = vsel %vm179, %v341, 0
  %345 = vmatprep.subr.bf16.mxu0 0
  %346 = vmatpush1.bf16.msra.mxu0 0
  %347 = vmatprep.subr.bf16.mxu0 0
  %348 = vmatpush1.bf16.msra.mxu0 0
  %349 = vmatprep.subr.bf16.mxu0 0
  %350 = vmatpush1.bf16.msra.mxu0 0
  %351 = vmatprep.subr.bf16.mxu0 0
  %352 = vmatpush1.bf16.msra.mxu0 0
  %353 = vmatprep.subr.bf16.mxu0 0
  %354 = vmatpush1.bf16.msra.mxu0 0
  %355 = vmatprep.subr.bf16.mxu0 0
  %356 = vmatpush1.bf16.msra.mxu0 0
  %357 = vmatprep.subr.bf16.mxu0 0
  %358 = vmatpush1.bf16.msra.mxu0 %v176
  %359 = vmatprep.subr.bf16.mxu0 0
  %360 = vmatpush1.bf16.msra.mxu0 %v175
  %361 = vmatprep.subr.bf16.mxu0 0
  %362 = vmatpush2.bf16.msra.mxu0 0
  %363 = vmatprep.subr.bf16.mxu0 0
  %364 = vmatpush2.bf16.msra.mxu0 0
  %365 = vmatprep.subr.bf16.mxu0 0
  %366 = vmatpush2.bf16.msra.mxu0 0
  %367 = vmatprep.subr.bf16.mxu0 0
  %368 = vmatpush2.bf16.msra.mxu0 0
  %369 = vmatprep.subr.bf16.mxu0 0
  %370 = vmatpush2.bf16.msra.mxu0 0
  %371 = vmatprep.subr.bf16.mxu0 0
  %372 = vmatpush2.bf16.msra.mxu0 0
  %373 = vmatprep.subr.bf16.mxu0 0
  %374 = vmatpush2.bf16.msra.mxu0 0
  %375 = vmatprep.subr.bf16.mxu0 0
  %376 = vmatpush2.bf16.msra.mxu0 0
  %377 = vmatprep.mubr.bf16.mxu0 0
  %378 = vmatmul.mubr.bf16.gmra.mxu0 %v343
  %v379 = vpop.f32.mrf.mxu0
  %v380 = vadd.f32 0.0, %v379
  %v381 = vpop.f32.mrf.mxu0
  %v382 = vpop.f32.mrf.mxu0
  %v383 = vpop.f32.mrf.mxu0
  %384 = vdwg.mxu0
  %v385 = vadd.f32 %v339, %v380
  %v386 = vxor.u32 %v385, 2147483648
  %v387 = vmul.f32 %v386, 1.442695
  %v388 = vpow.pop %v387
  %v389 = vadd.f32 %v388, 1.0
  %v390 = vrcp.pop %v389
  %v391 = vmul.f32 1.0, %v390
  %v392 = vtanh.pop %v385
  %v393 = vmul.f32 %v391, %v322
  %395 = vrot.lane.b32.xlu0 %v392, 64
  %v396 = vpop.permute.xlu0 %395
  %v398 = vmul.f32 %v391, %v396
  %400 = vrot.lane.b32.xlu0 %v398, 32
  %v401 = vpop.permute.xlu0 %400
  %v403 = vadd.f32 %v393, %v401
  %v404 = vtanh.pop %v403
  %406 = vrot.lane.b32.xlu0 %v404, 64
  %v407 = vpop.permute.xlu0 %406
  %v409 = vmul.f32 %v391, %v407
  %v410 = vpack.c.bf16 %v409, %v409
  %v412 = vunpack.c.l.b16 %v410
  %v413 = vpack.c.b16 %v412, %v412
  %414 = vrot.lane.b32.xlu0 %v413, 32
  %v415 = vpop.permute.xlu0 %414
  %s417 = scalar_lea.vmem [#allocation3], 8
  %418 = vst.msk [vmem:[%s417] sm:$0xf] %vm255, %v415
  %s419 = scalar_lea.vmem [#allocation2], 24
  %v420 = vld [vmem:[%s419] sm:$0xff]
  %421 = vrot.lane.b32.xlu0 %v410, 32
  %v422 = vpop.permute.xlu0 %421
  %v424 = vsel %vm179, %v422, 0
  %426 = vmatprep.subr.bf16.mxu0 0
  %427 = vmatpush1.bf16.msra.mxu0 0
  %428 = vmatprep.subr.bf16.mxu0 0
  %429 = vmatpush1.bf16.msra.mxu0 0
  %430 = vmatprep.subr.bf16.mxu0 0
  %431 = vmatpush1.bf16.msra.mxu0 0
  %432 = vmatprep.subr.bf16.mxu0 0
  %433 = vmatpush1.bf16.msra.mxu0 0
  %434 = vmatprep.subr.bf16.mxu0 0
  %435 = vmatpush1.bf16.msra.mxu0 0
  %436 = vmatprep.subr.bf16.mxu0 0
  %437 = vmatpush1.bf16.msra.mxu0 0
  %438 = vmatprep.subr.bf16.mxu0 0
  %439 = vmatpush1.bf16.msra.mxu0 %v176
  %440 = vmatprep.subr.bf16.mxu0 0
  %441 = vmatpush1.bf16.msra.mxu0 %v175
  %442 = vmatprep.subr.bf16.mxu0 0
  %443 = vmatpush2.bf16.msra.mxu0 0
  %444 = vmatprep.subr.bf16.mxu0 0
  %445 = vmatpush2.bf16.msra.mxu0 0
  %446 = vmatprep.subr.bf16.mxu0 0
  %447 = vmatpush2.bf16.msra.mxu0 0
  %448 = vmatprep.subr.bf16.mxu0 0
  %449 = vmatpush2.bf16.msra.mxu0 0
  %450 = vmatprep.subr.bf16.mxu0 0
  %451 = vmatpush2.bf16.msra.mxu0 0
  %452 = vmatprep.subr.bf16.mxu0 0
  %453 = vmatpush2.bf16.msra.mxu0 0
  %454 = vmatprep.subr.bf16.mxu0 0
  %455 = vmatpush2.bf16.msra.mxu0 0
  %456 = vmatprep.subr.bf16.mxu0 0
  %457 = vmatpush2.bf16.msra.mxu0 0
  %458 = vmatprep.mubr.bf16.mxu0 0
  %459 = vmatmul.mubr.bf16.gmra.mxu0 %v424
  %v460 = vpop.f32.mrf.mxu0
  %v461 = vadd.f32 0.0, %v460
  %v462 = vpop.f32.mrf.mxu0
  %v463 = vpop.f32.mrf.mxu0
  %v464 = vpop.f32.mrf.mxu0
  %465 = vdwg.mxu0
  %v466 = vadd.f32 %v420, %v461
  %v467 = vxor.u32 %v466, 2147483648
  %v468 = vmul.f32 %v467, 1.442695
  %v469 = vpow.pop %v468
  %v470 = vadd.f32 %v469, 1.0
  %v471 = vrcp.pop %v470
  %v472 = vmul.f32 1.0, %v471
  %v473 = vtanh.pop %v466
  %v474 = vmul.f32 %v472, %v403
  %476 = vrot.lane.b32.xlu0 %v473, 64
  %v477 = vpop.permute.xlu0 %476
  %v479 = vmul.f32 %v472, %v477
  %481 = vrot.lane.b32.xlu0 %v479, 32
  %v482 = vpop.permute.xlu0 %481
  %v484 = vadd.f32 %v474, %v482
  %v485 = vtanh.pop %v484
  %487 = vrot.lane.b32.xlu0 %v485, 64
  %v488 = vpop.permute.xlu0 %487
  %v490 = vmul.f32 %v472, %v488
  %v491 = vpack.c.bf16 %v490, %v490
  %v493 = vunpack.c.l.b16 %v491
  %v494 = vpack.c.b16 %v493, %v493
  %495 = vrot.lane.b32.xlu0 %v494, 32
  %v496 = vpop.permute.xlu0 %495
  %s498 = scalar_lea.vmem [#allocation3], 12
  %499 = vst.msk [vmem:[%s498] sm:$0xf] %vm255, %v496
  %s500 = scalar_lea.vmem [#allocation2], 32
  %v501 = vld [vmem:[%s500] sm:$0xff]
  %502 = vrot.lane.b32.xlu0 %v491, 32
  %v503 = vpop.permute.xlu0 %502
  %v505 = vsel %vm179, %v503, 0
  %507 = vmatprep.subr.bf16.mxu0 0
  %508 = vmatpush1.bf16.msra.mxu0 0
  %509 = vmatprep.subr.bf16.mxu0 0
  %510 = vmatpush1.bf16.msra.mxu0 0
  %511 = vmatprep.subr.bf16.mxu0 0
  %512 = vmatpush1.bf16.msra.mxu0 0
  %513 = vmatprep.subr.bf16.mxu0 0
  %514 = vmatpush1.bf16.msra.mxu0 0
  %515 = vmatprep.subr.bf16.mxu0 0
  %516 = vmatpush1.bf16.msra.mxu0 0
  %517 = vmatprep.subr.bf16.mxu0 0
  %518 = vmatpush1.bf16.msra.mxu0 0
  %519 = vmatprep.subr.bf16.mxu0 0
  %520 = vmatpush1.bf16.msra.mxu0 %v176
  %521 = vmatprep.subr.bf16.mxu0 0
  %522 = vmatpush1.bf16.msra.mxu0 %v175
  %523 = vmatprep.subr.bf16.mxu0 0
  %524 = vmatpush2.bf16.msra.mxu0 0
  %525 = vmatprep.subr.bf16.mxu0 0
  %526 = vmatpush2.bf16.msra.mxu0 0
  %527 = vmatprep.subr.bf16.mxu0 0
  %528 = vmatpush2.bf16.msra.mxu0 0
  %529 = vmatprep.subr.bf16.mxu0 0
  %530 = vmatpush2.bf16.msra.mxu0 0
  %531 = vmatprep.subr.bf16.mxu0 0
  %532 = vmatpush2.bf16.msra.mxu0 0
  %533 = vmatprep.subr.bf16.mxu0 0
  %534 = vmatpush2.bf16.msra.mxu0 0
  %535 = vmatprep.subr.bf16.mxu0 0
  %536 = vmatpush2.bf16.msra.mxu0 0
  %537 = vmatprep.subr.bf16.mxu0 0
  %538 = vmatpush2.bf16.msra.mxu0 0
  %539 = vmatprep.mubr.bf16.mxu0 0
  %540 = vmatmul.mubr.bf16.gmra.mxu0 %v505
  %v541 = vpop.f32.mrf.mxu0
  %v542 = vadd.f32 0.0, %v541
  %v543 = vpop.f32.mrf.mxu0
  %v544 = vpop.f32.mrf.mxu0
  %v545 = vpop.f32.mrf.mxu0
  %546 = vdwg.mxu0
  %v547 = vadd.f32 %v501, %v542
  %v548 = vxor.u32 %v547, 2147483648
  %v549 = vmul.f32 %v548, 1.442695
  %v550 = vpow.pop %v549
  %v551 = vadd.f32 %v550, 1.0
  %v552 = vrcp.pop %v551
  %v553 = vmul.f32 1.0, %v552
  %v554 = vtanh.pop %v547
  %v555 = vmul.f32 %v553, %v484
  %557 = vrot.lane.b32.xlu0 %v554, 64
  %v558 = vpop.permute.xlu0 %557
  %v560 = vmul.f32 %v553, %v558
  %562 = vrot.lane.b32.xlu0 %v560, 32
  %v563 = vpop.permute.xlu0 %562
  %v565 = vadd.f32 %v555, %v563
  %v566 = vtanh.pop %v565
  %568 = vrot.lane.b32.xlu0 %v566, 64
  %v569 = vpop.permute.xlu0 %568
  %v571 = vmul.f32 %v553, %v569
  %v572 = vpack.c.bf16 %v571, %v571
  %v574 = vunpack.c.l.b16 %v572
  %v575 = vpack.c.b16 %v574, %v574
  %576 = vrot.lane.b32.xlu0 %v575, 32
  %v577 = vpop.permute.xlu0 %576
  %s579 = scalar_lea.vmem [#allocation3], 16
  %580 = vst.msk [vmem:[%s579] sm:$0xf] %vm255, %v577
  %s581 = scalar_lea.vmem [#allocation2], 40
  %v582 = vld [vmem:[%s581] sm:$0xff]
  %583 = vrot.lane.b32.xlu0 %v572, 32
  %v584 = vpop.permute.xlu0 %583
  %v586 = vsel %vm179, %v584, 0
  %588 = vmatprep.subr.bf16.mxu0 0
  %589 = vmatpush1.bf16.msra.mxu0 0
  %590 = vmatprep.subr.bf16.mxu0 0
  %591 = vmatpush1.bf16.msra.mxu0 0
  %592 = vmatprep.subr.bf16.mxu0 0
  %593 = vmatpush1.bf16.msra.mxu0 0
  %594 = vmatprep.subr.bf16.mxu0 0
  %595 = vmatpush1.bf16.msra.mxu0 0
  %596 = vmatprep.subr.bf16.mxu0 0
  %597 = vmatpush1.bf16.msra.mxu0 0
  %598 = vmatprep.subr.bf16.mxu0 0
  %599 = vmatpush1.bf16.msra.mxu0 0
  %600 = vmatprep.subr.bf16.mxu0 0
  %601 = vmatpush1.bf16.msra.mxu0 %v176
  %602 = vmatprep.subr.bf16.mxu0 0
  %603 = vmatpush1.bf16.msra.mxu0 %v175
  %604 = vmatprep.subr.bf16.mxu0 0
  %605 = vmatpush2.bf16.msra.mxu0 0
  %606 = vmatprep.subr.bf16.mxu0 0
  %607 = vmatpush2.bf16.msra.mxu0 0
  %608 = vmatprep.subr.bf16.mxu0 0
  %609 = vmatpush2.bf16.msra.mxu0 0
  %610 = vmatprep.subr.bf16.mxu0 0
  %611 = vmatpush2.bf16.msra.mxu0 0
  %612 = vmatprep.subr.bf16.mxu0 0
  %613 = vmatpush2.bf16.msra.mxu0 0
  %614 = vmatprep.subr.bf16.mxu0 0
  %615 = vmatpush2.bf16.msra.mxu0 0
  %616 = vmatprep.subr.bf16.mxu0 0
  %617 = vmatpush2.bf16.msra.mxu0 0
  %618 = vmatprep.subr.bf16.mxu0 0
  %619 = vmatpush2.bf16.msra.mxu0 0
  %620 = vmatprep.mubr.bf16.mxu0 0
  %621 = vmatmul.mubr.bf16.gmra.mxu0 %v586
  %v622 = vpop.f32.mrf.mxu0
  %v623 = vadd.f32 0.0, %v622
  %v624 = vpop.f32.mrf.mxu0
  %v625 = vpop.f32.mrf.mxu0
  %v626 = vpop.f32.mrf.mxu0
  %627 = vdwg.mxu0
  %v628 = vadd.f32 %v582, %v623
  %v629 = vxor.u32 %v628, 2147483648
  %v630 = vmul.f32 %v629, 1.442695
  %v631 = vpow.pop %v630
  %v632 = vadd.f32 %v631, 1.0
  %v633 = vrcp.pop %v632
  %v634 = vmul.f32 1.0, %v633
  %v635 = vtanh.pop %v628
  %v636 = vmul.f32 %v634, %v565
  %638 = vrot.lane.b32.xlu0 %v635, 64
  %v639 = vpop.permute.xlu0 %638
  %v641 = vmul.f32 %v634, %v639
  %643 = vrot.lane.b32.xlu0 %v641, 32
  %v644 = vpop.permute.xlu0 %643
  %v646 = vadd.f32 %v636, %v644
  %v647 = vtanh.pop %v646
  %649 = vrot.lane.b32.xlu0 %v647, 64
  %v650 = vpop.permute.xlu0 %649
  %v652 = vmul.f32 %v634, %v650
  %v653 = vpack.c.bf16 %v652, %v652
  %v655 = vunpack.c.l.b16 %v653
  %v656 = vpack.c.b16 %v655, %v655
  %657 = vrot.lane.b32.xlu0 %v656, 32
  %v658 = vpop.permute.xlu0 %657
  %s660 = scalar_lea.vmem [#allocation3], 20
  %661 = vst.msk [vmem:[%s660] sm:$0xf] %vm255, %v658
  %s662 = scalar_lea.vmem [#allocation2], 48
  %v663 = vld [vmem:[%s662] sm:$0xff]
  %664 = vrot.lane.b32.xlu0 %v653, 32
  %v665 = vpop.permute.xlu0 %664
  %v667 = vsel %vm179, %v665, 0
  %669 = vmatprep.subr.bf16.mxu0 0
  %670 = vmatpush1.bf16.msra.mxu0 0
  %671 = vmatprep.subr.bf16.mxu0 0
  %672 = vmatpush1.bf16.msra.mxu0 0
  %673 = vmatprep.subr.bf16.mxu0 0
  %674 = vmatpush1.bf16.msra.mxu0 0
  %675 = vmatprep.subr.bf16.mxu0 0
  %676 = vmatpush1.bf16.msra.mxu0 0
  %677 = vmatprep.subr.bf16.mxu0 0
  %678 = vmatpush1.bf16.msra.mxu0 0
  %679 = vmatprep.subr.bf16.mxu0 0
  %680 = vmatpush1.bf16.msra.mxu0 0
  %681 = vmatprep.subr.bf16.mxu0 0
  %682 = vmatpush1.bf16.msra.mxu0 %v176
  %683 = vmatprep.subr.bf16.mxu0 0
  %684 = vmatpush1.bf16.msra.mxu0 %v175
  %685 = vmatprep.subr.bf16.mxu0 0
  %686 = vmatpush2.bf16.msra.mxu0 0
  %687 = vmatprep.subr.bf16.mxu0 0
  %688 = vmatpush2.bf16.msra.mxu0 0
  %689 = vmatprep.subr.bf16.mxu0 0
  %690 = vmatpush2.bf16.msra.mxu0 0
  %691 = vmatprep.subr.bf16.mxu0 0
  %692 = vmatpush2.bf16.msra.mxu0 0
  %693 = vmatprep.subr.bf16.mxu0 0
  %694 = vmatpush2.bf16.msra.mxu0 0
  %695 = vmatprep.subr.bf16.mxu0 0
  %696 = vmatpush2.bf16.msra.mxu0 0
  %697 = vmatprep.subr.bf16.mxu0 0
  %698 = vmatpush2.bf16.msra.mxu0 0
  %699 = vmatprep.subr.bf16.mxu0 0
  %700 = vmatpush2.bf16.msra.mxu0 0
  %701 = vmatprep.mubr.bf16.mxu0 0
  %702 = vmatmul.mubr.bf16.gmra.mxu0 %v667
  %v703 = vpop.f32.mrf.mxu0
  %v704 = vadd.f32 0.0, %v703
  %v705 = vpop.f32.mrf.mxu0
  %v706 = vpop.f32.mrf.mxu0
  %v707 = vpop.f32.mrf.mxu0
  %708 = vdwg.mxu0
  %v709 = vadd.f32 %v663, %v704
  %v710 = vxor.u32 %v709, 2147483648
  %v711 = vmul.f32 %v710, 1.442695
  %v712 = vpow.pop %v711
  %v713 = vadd.f32 %v712, 1.0
  %v714 = vrcp.pop %v713
  %v715 = vmul.f32 1.0, %v714
  %v716 = vtanh.pop %v709
  %v717 = vmul.f32 %v715, %v646
  %719 = vrot.lane.b32.xlu0 %v716, 64
  %v720 = vpop.permute.xlu0 %719
  %v722 = vmul.f32 %v715, %v720
  %724 = vrot.lane.b32.xlu0 %v722, 32
  %v725 = vpop.permute.xlu0 %724
  %v727 = vadd.f32 %v717, %v725
  %v728 = vtanh.pop %v727
  %730 = vrot.lane.b32.xlu0 %v728, 64
  %v731 = vpop.permute.xlu0 %730
  %v733 = vmul.f32 %v715, %v731
  %v734 = vpack.c.bf16 %v733, %v733
  %v736 = vunpack.c.l.b16 %v734
  %v737 = vpack.c.b16 %v736, %v736
  %738 = vrot.lane.b32.xlu0 %v737, 32
  %v739 = vpop.permute.xlu0 %738
  %s741 = scalar_lea.vmem [#allocation3], 24
  %742 = vst.msk [vmem:[%s741] sm:$0xf] %vm255, %v739
  %s743 = scalar_lea.vmem [#allocation2], 56
  %v744 = vld [vmem:[%s743] sm:$0xff]
  %745 = vrot.lane.b32.xlu0 %v734, 32
  %v746 = vpop.permute.xlu0 %745
  %v748 = vsel %vm179, %v746, 0
  %750 = vmatprep.subr.bf16.mxu0 0
  %751 = vmatpush1.bf16.msra.mxu0 0
  %752 = vmatprep.subr.bf16.mxu0 0
  %753 = vmatpush1.bf16.msra.mxu0 0
  %754 = vmatprep.subr.bf16.mxu0 0
  %755 = vmatpush1.bf16.msra.mxu0 0
  %756 = vmatprep.subr.bf16.mxu0 0
  %757 = vmatpush1.bf16.msra.mxu0 0
  %758 = vmatprep.subr.bf16.mxu0 0
  %759 = vmatpush1.bf16.msra.mxu0 0
  %760 = vmatprep.subr.bf16.mxu0 0
  %761 = vmatpush1.bf16.msra.mxu0 0
  %762 = vmatprep.subr.bf16.mxu0 0
  %763 = vmatpush1.bf16.msra.mxu0 %v176
  %764 = vmatprep.subr.bf16.mxu0 0
  %765 = vmatpush1.bf16.msra.mxu0 %v175
  %766 = vmatprep.subr.bf16.mxu0 0
  %767 = vmatpush2.bf16.msra.mxu0 0
  %768 = vmatprep.subr.bf16.mxu0 0
  %769 = vmatpush2.bf16.msra.mxu0 0
  %770 = vmatprep.subr.bf16.mxu0 0
  %771 = vmatpush2.bf16.msra.mxu0 0
  %772 = vmatprep.subr.bf16.mxu0 0
  %773 = vmatpush2.bf16.msra.mxu0 0
  %774 = vmatprep.subr.bf16.mxu0 0
  %775 = vmatpush2.bf16.msra.mxu0 0
  %776 = vmatprep.subr.bf16.mxu0 0
  %777 = vmatpush2.bf16.msra.mxu0 0
  %778 = vmatprep.subr.bf16.mxu0 0
  %779 = vmatpush2.bf16.msra.mxu0 0
  %780 = vmatprep.subr.bf16.mxu0 0
  %781 = vmatpush2.bf16.msra.mxu0 0
  %782 = vmatprep.mubr.bf16.mxu0 0
  %783 = vmatmul.mubr.bf16.gmra.mxu0 %v748
  %v784 = vpop.f32.mrf.mxu0
  %v785 = vadd.f32 0.0, %v784
  %v786 = vpop.f32.mrf.mxu0
  %v787 = vpop.f32.mrf.mxu0
  %v788 = vpop.f32.mrf.mxu0
  %789 = vdwg.mxu0
  %v790 = vadd.f32 %v744, %v785
  %v791 = vxor.u32 %v790, 2147483648
  %v792 = vmul.f32 %v791, 1.442695
  %v793 = vpow.pop %v792
  %v794 = vadd.f32 %v793, 1.0
  %v795 = vrcp.pop %v794
  %v796 = vmul.f32 1.0, %v795
  %v797 = vtanh.pop %v790
  %v798 = vmul.f32 %v796, %v727
  %800 = vrot.lane.b32.xlu0 %v797, 64
  %v801 = vpop.permute.xlu0 %800
  %v803 = vmul.f32 %v796, %v801
  %805 = vrot.lane.b32.xlu0 %v803, 32
  %v806 = vpop.permute.xlu0 %805
  %v808 = vadd.f32 %v798, %v806
  %v809 = vtanh.pop %v808
  %811 = vrot.lane.b32.xlu0 %v809, 64
  %v812 = vpop.permute.xlu0 %811
  %v814 = vmul.f32 %v796, %v812
  %v815 = vpack.c.bf16 %v814, %v814
  %v817 = vunpack.c.l.b16 %v815
  %v818 = vpack.c.b16 %v817, %v817
  %819 = vrot.lane.b32.xlu0 %v818, 32
  %v820 = vpop.permute.xlu0 %819
  %s822 = scalar_lea.vmem [#allocation3], 28
  %823 = vst.msk [vmem:[%s822] sm:$0xf] %vm255, %v820
  %v824 = vld [vmem:[#allocation3] sm:$0xf]
  %v825 = vld [vmem:[#allocation3 + $0x4] sm:$0xf]
  %v826 = vld [vmem:[#allocation3 + $0x8] sm:$0xf]
  %v827 = vld [vmem:[#allocation3 + $0xc] sm:$0xf]
  %v828 = vld [vmem:[#allocation3 + $0x10] sm:$0xf]
  %v829 = vld [vmem:[#allocation3 + $0x14] sm:$0xf]
  %v830 = vld [vmem:[#allocation3 + $0x18] sm:$0xf]
  %v831 = vld [vmem:[#allocation3 + $0x1c] sm:$0xf]
  %v832 = vld [vmem:[%s4] sm:$0xf]
  %v833 = vld [vmem:[%s4 + $0x4] sm:$0xf]
  %v834 = vld [vmem:[%s4 + $0x8] sm:$0xf]
  %v835 = vld [vmem:[%s4 + $0xc] sm:$0xf]
  %v836 = vld [vmem:[%s6] sm:$0x1]
  %v838 = vlaneseq
  %v839 = vshrl.u32 %v838, 7
  %v840 = vsub.s32 0, %v839
  %v841 = vrot.slane %v836, %v840
  %v851 = vunpack.c.l.b16 %v824
  %v852 = vunpack.c.l.b16 %v825
  %v853 = vunpack.c.l.b16 %v826
  %v854 = vunpack.c.l.b16 %v827
  %v855 = vunpack.c.l.b16 %v828
  %v856 = vunpack.c.l.b16 %v829
  %v857 = vunpack.c.l.b16 %v830
  %v858 = vunpack.c.l.b16 %v831
  %v859 = vpack.c.b16 %v852, %v851
  %v860 = vpack.c.b16 %v854, %v853
  %v861 = vpack.c.b16 %v856, %v855
  %v862 = vpack.c.b16 %v858, %v857
  %v867 = vunpack.c.l.b16 %v832
  %v868 = vunpack.c.l.b16 %v833
  %v869 = vunpack.c.l.b16 %v834
  %v870 = vunpack.c.l.b16 %v835
  %v871 = vpack.c.b16 %v868, %v867
  %v872 = vpack.c.b16 %v870, %v869
  %v876 = vsel %vm179, %v859, 0
  %v879 = vsel %vm179, %v860, 0
  %v882 = vsel %vm179, %v861, 0
  %v885 = vsel %vm179, %v862, 0
  %887 = vmatprep.subr.bf16.mxu0 0
  %888 = vmatpush1.bf16.msra.mxu0 0
  %889 = vmatprep.subr.bf16.mxu0 0
  %890 = vmatpush1.bf16.msra.mxu0 0
  %891 = vmatprep.subr.bf16.mxu0 0
  %892 = vmatpush1.bf16.msra.mxu0 0
  %893 = vmatprep.subr.bf16.mxu0 0
  %894 = vmatpush1.bf16.msra.mxu0 0
  %895 = vmatprep.subr.bf16.mxu0 0
  %896 = vmatpush1.bf16.msra.mxu0 0
  %897 = vmatprep.subr.bf16.mxu0 0
  %898 = vmatpush1.bf16.msra.mxu0 0
  %899 = vmatprep.subr.bf16.mxu0 0
  %900 = vmatpush1.bf16.msra.mxu0 %v872
  %901 = vmatprep.subr.bf16.mxu0 0
  %902 = vmatpush1.bf16.msra.mxu0 %v871
  %903 = vmatprep.subr.bf16.mxu0 0
  %904 = vmatpush2.bf16.msra.mxu0 0
  %905 = vmatprep.subr.bf16.mxu0 0
  %906 = vmatpush2.bf16.msra.mxu0 0
  %907 = vmatprep.subr.bf16.mxu0 0
  %908 = vmatpush2.bf16.msra.mxu0 0
  %909 = vmatprep.subr.bf16.mxu0 0
  %910 = vmatpush2.bf16.msra.mxu0 0
  %911 = vmatprep.subr.bf16.mxu0 0
  %912 = vmatpush2.bf16.msra.mxu0 0
  %913 = vmatprep.subr.bf16.mxu0 0
  %914 = vmatpush2.bf16.msra.mxu0 0
  %915 = vmatprep.subr.bf16.mxu0 0
  %916 = vmatpush2.bf16.msra.mxu0 0
  %917 = vmatprep.subr.bf16.mxu0 0
  %918 = vmatpush2.bf16.msra.mxu0 0
  %919 = vmatprep.mubr.bf16.mxu0 0
  %920 = vmatmul.mubr.bf16.gmra.mxu0 %v876
  %v921 = vpop.f32.mrf.mxu0
  %v922 = vadd.f32 %v841, %v921
  %v923 = vpop.f32.mrf.mxu0
  %v924 = vpop.f32.mrf.mxu0
  %v925 = vadd.f32 %v841, %v924
  %v926 = vpop.f32.mrf.mxu0
  %927 = vmatprep.mubr.bf16.mxu0 0
  %928 = vmatmul.mubr.bf16.gmra.mxu0 %v879
  %v929 = vpop.f32.mrf.mxu0
  %v930 = vadd.f32 %v841, %v929
  %v931 = vpop.f32.mrf.mxu0
  %v932 = vpop.f32.mrf.mxu0
  %v933 = vadd.f32 %v841, %v932
  %v934 = vpop.f32.mrf.mxu0
  %935 = vmatprep.mubr.bf16.mxu0 0
  %936 = vmatmul.mubr.bf16.gmra.mxu0 %v882
  %v937 = vpop.f32.mrf.mxu0
  %v938 = vadd.f32 %v841, %v937
  %v939 = vpop.f32.mrf.mxu0
  %v940 = vpop.f32.mrf.mxu0
  %v941 = vadd.f32 %v841, %v940
  %v942 = vpop.f32.mrf.mxu0
  %943 = vmatprep.mubr.bf16.mxu0 0
  %944 = vmatmul.mubr.bf16.gmra.mxu0 %v885
  %v945 = vpop.f32.mrf.mxu0
  %v946 = vadd.f32 %v841, %v945
  %v947 = vpop.f32.mrf.mxu0
  %v948 = vpop.f32.mrf.mxu0
  %v949 = vadd.f32 %v841, %v948
  %v950 = vpop.f32.mrf.mxu0
  %951 = vdwg.mxu0
  %952 = vst [vmem:[#allocation2] sm:$0xff] %v922
  %953 = vst [vmem:[#allocation2 + $0x8] sm:$0xff] %v925
  %954 = vst [vmem:[#allocation2 + $0x10] sm:$0xff] %v930
  %955 = vst [vmem:[#allocation2 + $0x18] sm:$0xff] %v933
  %956 = vst [vmem:[#allocation2 + $0x20] sm:$0xff] %v938
  %957 = vst [vmem:[#allocation2 + $0x28] sm:$0xff] %v941
  %958 = vst [vmem:[#allocation2 + $0x30] sm:$0xff] %v946
  %959 = vst [vmem:[#allocation2 + $0x38] sm:$0xff] %v949
  %v960 = vld [vmem:[%s5] sm:$0xf]
  %v961 = vld [vmem:[%s5 + $0x4] sm:$0xf]
  %v962 = vld [vmem:[%s5 + $0x8] sm:$0xf]
  %v963 = vld [vmem:[%s5 + $0xc] sm:$0xf]
  %v964 = vld [vmem:[#allocation2] sm:$0xff]
  %v969 = vunpack.c.l.b16 %v960
  %v970 = vunpack.c.l.b16 %v961
  %v971 = vunpack.c.l.b16 %v962
  %v972 = vunpack.c.l.b16 %v963
  %v973 = vpack.c.b16 %v970, %v969
  %v974 = vpack.c.b16 %v972, %v971
  %977 = vmatprep.subr.bf16.mxu0 0
  %978 = vmatpush1.bf16.msra.mxu0 0
  %979 = vmatprep.subr.bf16.mxu0 0
  %980 = vmatpush1.bf16.msra.mxu0 0
  %981 = vmatprep.subr.bf16.mxu0 0
  %982 = vmatpush1.bf16.msra.mxu0 0
  %983 = vmatprep.subr.bf16.mxu0 0
  %984 = vmatpush1.bf16.msra.mxu0 0
  %985 = vmatprep.subr.bf16.mxu0 0
  %986 = vmatpush1.bf16.msra.mxu0 0
  %987 = vmatprep.subr.bf16.mxu0 0
  %988 = vmatpush1.bf16.msra.mxu0 0
  %989 = vmatprep.subr.bf16.mxu0 0
  %990 = vmatpush1.bf16.msra.mxu0 %v974
  %991 = vmatprep.subr.bf16.mxu0 0
  %992 = vmatpush1.bf16.msra.mxu0 %v973
  %993 = vmatprep.subr.bf16.mxu0 0
  %994 = vmatpush2.bf16.msra.mxu0 0
  %995 = vmatprep.subr.bf16.mxu0 0
  %996 = vmatpush2.bf16.msra.mxu0 0
  %997 = vmatprep.subr.bf16.mxu0 0
  %998 = vmatpush2.bf16.msra.mxu0 0
  %999 = vmatprep.subr.bf16.mxu0 0
  %1000 = vmatpush2.bf16.msra.mxu0 0
  %1001 = vmatprep.subr.bf16.mxu0 0
  %1002 = vmatpush2.bf16.msra.mxu0 0
  %1003 = vmatprep.subr.bf16.mxu0 0
  %1004 = vmatpush2.bf16.msra.mxu0 0
  %1005 = vmatprep.subr.bf16.mxu0 0
  %1006 = vmatpush2.bf16.msra.mxu0 0
  %1007 = vmatprep.subr.bf16.mxu0 0
  %1008 = vmatpush2.bf16.msra.mxu0 0
  %1009 = vmatprep.mubr.bf16.mxu0 0
  %1010 = vmatmul.mubr.bf16.gmra.mxu0 %v181
  %v1011 = vpop.f32.mrf.mxu0
  %v1012 = vadd.f32 0.0, %v1011
  %v1013 = vpop.f32.mrf.mxu0
  %v1014 = vpop.f32.mrf.mxu0
  %v1015 = vpop.f32.mrf.mxu0
  %1016 = vdwg.mxu0
  %v1017 = vadd.f32 %v964, %v1012
  %v1018 = vxor.u32 %v1017, 2147483648
  %v1019 = vmul.f32 %v1018, 1.442695
  %v1020 = vpow.pop %v1019
  %v1021 = vadd.f32 %v1020, 1.0
  %v1022 = vrcp.pop %v1021
  %v1023 = vmul.f32 1.0, %v1022
  %v1024 = vtanh.pop %v1017
  %v1025 = vmul.f32 %v1023, 0.0
  %1027 = vrot.lane.b32.xlu0 %v1024, 64
  %v1028 = vpop.permute.xlu0 %1027
  %v1030 = vmul.f32 %v1023, %v1028
  %1032 = vrot.lane.b32.xlu0 %v1030, 32
  %v1033 = vpop.permute.xlu0 %1032
  %v1035 = vadd.f32 %v1025, %v1033
  %v1036 = vtanh.pop %v1035
  %1038 = vrot.lane.b32.xlu0 %v1036, 64
  %v1039 = vpop.permute.xlu0 %1038
  %v1041 = vmul.f32 %v1023, %v1039
  %v1042 = vld [vmem:[%s257] sm:$0xff]
  %v1043 = vpack.c.bf16 %v1041, %v1041
  %1045 = vrot.lane.b32.xlu0 %v1043, 32
  %v1046 = vpop.permute.xlu0 %1045
  %v1048 = vsel %vm179, %v1046, 0
  %1050 = vmatprep.subr.bf16.mxu0 0
  %1051 = vmatpush1.bf16.msra.mxu0 0
  %1052 = vmatprep.subr.bf16.mxu0 0
  %1053 = vmatpush1.bf16.msra.mxu0 0
  %1054 = vmatprep.subr.bf16.mxu0 0
  %1055 = vmatpush1.bf16.msra.mxu0 0
  %1056 = vmatprep.subr.bf16.mxu0 0
  %1057 = vmatpush1.bf16.msra.mxu0 0
  %1058 = vmatprep.subr.bf16.mxu0 0
  %1059 = vmatpush1.bf16.msra.mxu0 0
  %1060 = vmatprep.subr.bf16.mxu0 0
  %1061 = vmatpush1.bf16.msra.mxu0 0
  %1062 = vmatprep.subr.bf16.mxu0 0
  %1063 = vmatpush1.bf16.msra.mxu0 %v974
  %1064 = vmatprep.subr.bf16.mxu0 0
  %1065 = vmatpush1.bf16.msra.mxu0 %v973
  %1066 = vmatprep.subr.bf16.mxu0 0
  %1067 = vmatpush2.bf16.msra.mxu0 0
  %1068 = vmatprep.subr.bf16.mxu0 0
  %1069 = vmatpush2.bf16.msra.mxu0 0
  %1070 = vmatprep.subr.bf16.mxu0 0
  %1071 = vmatpush2.bf16.msra.mxu0 0
  %1072 = vmatprep.subr.bf16.mxu0 0
  %1073 = vmatpush2.bf16.msra.mxu0 0
  %1074 = vmatprep.subr.bf16.mxu0 0
  %1075 = vmatpush2.bf16.msra.mxu0 0
  %1076 = vmatprep.subr.bf16.mxu0 0
  %1077 = vmatpush2.bf16.msra.mxu0 0
  %1078 = vmatprep.subr.bf16.mxu0 0
  %1079 = vmatpush2.bf16.msra.mxu0 0
  %1080 = vmatprep.subr.bf16.mxu0 0
  %1081 = vmatpush2.bf16.msra.mxu0 0
  %1082 = vmatprep.mubr.bf16.mxu0 0
  %1083 = vmatmul.mubr.bf16.gmra.mxu0 %v1048
  %v1084 = vpop.f32.mrf.mxu0
  %v1085 = vadd.f32 0.0, %v1084
  %v1086 = vpop.f32.mrf.mxu0
  %v1087 = vpop.f32.mrf.mxu0
  %v1088 = vpop.f32.mrf.mxu0
  %1089 = vdwg.mxu0
  %v1090 = vadd.f32 %v1042, %v1085
  %v1091 = vxor.u32 %v1090, 2147483648
  %v1092 = vmul.f32 %v1091, 1.442695
  %v1093 = vpow.pop %v1092
  %v1094 = vadd.f32 %v1093, 1.0
  %v1095 = vrcp.pop %v1094
  %v1096 = vmul.f32 1.0, %v1095
  %v1097 = vtanh.pop %v1090
  %v1098 = vmul.f32 %v1096, %v1035
  %1100 = vrot.lane.b32.xlu0 %v1097, 64
  %v1101 = vpop.permute.xlu0 %1100
  %v1103 = vmul.f32 %v1096, %v1101
  %1105 = vrot.lane.b32.xlu0 %v1103, 32
  %v1106 = vpop.permute.xlu0 %1105
  %v1108 = vadd.f32 %v1098, %v1106
  %v1109 = vtanh.pop %v1108
  %1111 = vrot.lane.b32.xlu0 %v1109, 64
  %v1112 = vpop.permute.xlu0 %1111
  %v1114 = vmul.f32 %v1096, %v1112
  %v1115 = vld [vmem:[%s338] sm:$0xff]
  %v1116 = vpack.c.bf16 %v1114, %v1114
  %1118 = vrot.lane.b32.xlu0 %v1116, 32
  %v1119 = vpop.permute.xlu0 %1118
  %v1121 = vsel %vm179, %v1119, 0
  %1123 = vmatprep.subr.bf16.mxu0 0
  %1124 = vmatpush1.bf16.msra.mxu0 0
  %1125 = vmatprep.subr.bf16.mxu0 0
  %1126 = vmatpush1.bf16.msra.mxu0 0
  %1127 = vmatprep.subr.bf16.mxu0 0
  %1128 = vmatpush1.bf16.msra.mxu0 0
  %1129 = vmatprep.subr.bf16.mxu0 0
  %1130 = vmatpush1.bf16.msra.mxu0 0
  %1131 = vmatprep.subr.bf16.mxu0 0
  %1132 = vmatpush1.bf16.msra.mxu0 0
  %1133 = vmatprep.subr.bf16.mxu0 0
  %1134 = vmatpush1.bf16.msra.mxu0 0
  %1135 = vmatprep.subr.bf16.mxu0 0
  %1136 = vmatpush1.bf16.msra.mxu0 %v974
  %1137 = vmatprep.subr.bf16.mxu0 0
  %1138 = vmatpush1.bf16.msra.mxu0 %v973
  %1139 = vmatprep.subr.bf16.mxu0 0
  %1140 = vmatpush2.bf16.msra.mxu0 0
  %1141 = vmatprep.subr.bf16.mxu0 0
  %1142 = vmatpush2.bf16.msra.mxu0 0
  %1143 = vmatprep.subr.bf16.mxu0 0
  %1144 = vmatpush2.bf16.msra.mxu0 0
  %1145 = vmatprep.subr.bf16.mxu0 0
  %1146 = vmatpush2.bf16.msra.mxu0 0
  %1147 = vmatprep.subr.bf16.mxu0 0
  %1148 = vmatpush2.bf16.msra.mxu0 0
  %1149 = vmatprep.subr.bf16.mxu0 0
  %1150 = vmatpush2.bf16.msra.mxu0 0
  %1151 = vmatprep.subr.bf16.mxu0 0
  %1152 = vmatpush2.bf16.msra.mxu0 0
  %1153 = vmatprep.subr.bf16.mxu0 0
  %1154 = vmatpush2.bf16.msra.mxu0 0
  %1155 = vmatprep.mubr.bf16.mxu0 0
  %1156 = vmatmul.mubr.bf16.gmra.mxu0 %v1121
  %v1157 = vpop.f32.mrf.mxu0
  %v1158 = vadd.f32 0.0, %v1157
  %v1159 = vpop.f32.mrf.mxu0
  %v1160 = vpop.f32.mrf.mxu0
  %v1161 = vpop.f32.mrf.mxu0
  %1162 = vdwg.mxu0
  %v1163 = vadd.f32 %v1115, %v1158
  %v1164 = vxor.u32 %v1163, 2147483648
  %v1165 = vmul.f32 %v1164, 1.442695
  %v1166 = vpow.pop %v1165
  %v1167 = vadd.f32 %v1166, 1.0
  %v1168 = vrcp.pop %v1167
  %v1169 = vmul.f32 1.0, %v1168
  %v1170 = vtanh.pop %v1163
  %v1171 = vmul.f32 %v1169, %v1108
  %1173 = vrot.lane.b32.xlu0 %v1170, 64
  %v1174 = vpop.permute.xlu0 %1173
  %v1176 = vmul.f32 %v1169, %v1174
  %1178 = vrot.lane.b32.xlu0 %v1176, 32
  %v1179 = vpop.permute.xlu0 %1178
  %v1181 = vadd.f32 %v1171, %v1179
  %v1182 = vtanh.pop %v1181
  %1184 = vrot.lane.b32.xlu0 %v1182, 64
  %v1185 = vpop.permute.xlu0 %1184
  %v1187 = vmul.f32 %v1169, %v1185
  %v1188 = vld [vmem:[%s419] sm:$0xff]
  %v1189 = vpack.c.bf16 %v1187, %v1187
  %1191 = vrot.lane.b32.xlu0 %v1189, 32
  %v1192 = vpop.permute.xlu0 %1191
  %v1194 = vsel %vm179, %v1192, 0
  %1196 = vmatprep.subr.bf16.mxu0 0
  %1197 = vmatpush1.bf16.msra.mxu0 0
  %1198 = vmatprep.subr.bf16.mxu0 0
  %1199 = vmatpush1.bf16.msra.mxu0 0
  %1200 = vmatprep.subr.bf16.mxu0 0
  %1201 = vmatpush1.bf16.msra.mxu0 0
  %1202 = vmatprep.subr.bf16.mxu0 0
  %1203 = vmatpush1.bf16.msra.mxu0 0
  %1204 = vmatprep.subr.bf16.mxu0 0
  %1205 = vmatpush1.bf16.msra.mxu0 0
  %1206 = vmatprep.subr.bf16.mxu0 0
  %1207 = vmatpush1.bf16.msra.mxu0 0
  %1208 = vmatprep.subr.bf16.mxu0 0
  %1209 = vmatpush1.bf16.msra.mxu0 %v974
  %1210 = vmatprep.subr.bf16.mxu0 0
  %1211 = vmatpush1.bf16.msra.mxu0 %v973
  %1212 = vmatprep.subr.bf16.mxu0 0
  %1213 = vmatpush2.bf16.msra.mxu0 0
  %1214 = vmatprep.subr.bf16.mxu0 0
  %1215 = vmatpush2.bf16.msra.mxu0 0
  %1216 = vmatprep.subr.bf16.mxu0 0
  %1217 = vmatpush2.bf16.msra.mxu0 0
  %1218 = vmatprep.subr.bf16.mxu0 0
  %1219 = vmatpush2.bf16.msra.mxu0 0
  %1220 = vmatprep.subr.bf16.mxu0 0
  %1221 = vmatpush2.bf16.msra.mxu0 0
  %1222 = vmatprep.subr.bf16.mxu0 0
  %1223 = vmatpush2.bf16.msra.mxu0 0
  %1224 = vmatprep.subr.bf16.mxu0 0
  %1225 = vmatpush2.bf16.msra.mxu0 0
  %1226 = vmatprep.subr.bf16.mxu0 0
  %1227 = vmatpush2.bf16.msra.mxu0 0
  %1228 = vmatprep.mubr.bf16.mxu0 0
  %1229 = vmatmul.mubr.bf16.gmra.mxu0 %v1194
  %v1230 = vpop.f32.mrf.mxu0
  %v1231 = vadd.f32 0.0, %v1230
  %v1232 = vpop.f32.mrf.mxu0
  %v1233 = vpop.f32.mrf.mxu0
  %v1234 = vpop.f32.mrf.mxu0
  %1235 = vdwg.mxu0
  %v1236 = vadd.f32 %v1188, %v1231
  %v1237 = vxor.u32 %v1236, 2147483648
  %v1238 = vmul.f32 %v1237, 1.442695
  %v1239 = vpow.pop %v1238
  %v1240 = vadd.f32 %v1239, 1.0
  %v1241 = vrcp.pop %v1240
  %v1242 = vmul.f32 1.0, %v1241
  %v1243 = vtanh.pop %v1236
  %v1244 = vmul.f32 %v1242, %v1181
  %1246 = vrot.lane.b32.xlu0 %v1243, 64
  %v1247 = vpop.permute.xlu0 %1246
  %v1249 = vmul.f32 %v1242, %v1247
  %1251 = vrot.lane.b32.xlu0 %v1249, 32
  %v1252 = vpop.permute.xlu0 %1251
  %v1254 = vadd.f32 %v1244, %v1252
  %v1255 = vtanh.pop %v1254
  %1257 = vrot.lane.b32.xlu0 %v1255, 64
  %v1258 = vpop.permute.xlu0 %1257
  %v1260 = vmul.f32 %v1242, %v1258
  %v1261 = vld [vmem:[%s500] sm:$0xff]
  %v1262 = vpack.c.bf16 %v1260, %v1260
  %1264 = vrot.lane.b32.xlu0 %v1262, 32
  %v1265 = vpop.permute.xlu0 %1264
  %v1267 = vsel %vm179, %v1265, 0
  %1269 = vmatprep.subr.bf16.mxu0 0
  %1270 = vmatpush1.bf16.msra.mxu0 0
  %1271 = vmatprep.subr.bf16.mxu0 0
  %1272 = vmatpush1.bf16.msra.mxu0 0
  %1273 = vmatprep.subr.bf16.mxu0 0
  %1274 = vmatpush1.bf16.msra.mxu0 0
  %1275 = vmatprep.subr.bf16.mxu0 0
  %1276 = vmatpush1.bf16.msra.mxu0 0
  %1277 = vmatprep.subr.bf16.mxu0 0
  %1278 = vmatpush1.bf16.msra.mxu0 0
  %1279 = vmatprep.subr.bf16.mxu0 0
  %1280 = vmatpush1.bf16.msra.mxu0 0
  %1281 = vmatprep.subr.bf16.mxu0 0
  %1282 = vmatpush1.bf16.msra.mxu0 %v974
  %1283 = vmatprep.subr.bf16.mxu0 0
  %1284 = vmatpush1.bf16.msra.mxu0 %v973
  %1285 = vmatprep.subr.bf16.mxu0 0
  %1286 = vmatpush2.bf16.msra.mxu0 0
  %1287 = vmatprep.subr.bf16.mxu0 0
  %1288 = vmatpush2.bf16.msra.mxu0 0
  %1289 = vmatprep.subr.bf16.mxu0 0
  %1290 = vmatpush2.bf16.msra.mxu0 0
  %1291 = vmatprep.subr.bf16.mxu0 0
  %1292 = vmatpush2.bf16.msra.mxu0 0
  %1293 = vmatprep.subr.bf16.mxu0 0
  %1294 = vmatpush2.bf16.msra.mxu0 0
  %1295 = vmatprep.subr.bf16.mxu0 0
  %1296 = vmatpush2.bf16.msra.mxu0 0
  %1297 = vmatprep.subr.bf16.mxu0 0
  %1298 = vmatpush2.bf16.msra.mxu0 0
  %1299 = vmatprep.subr.bf16.mxu0 0
  %1300 = vmatpush2.bf16.msra.mxu0 0
  %1301 = vmatprep.mubr.bf16.mxu0 0
  %1302 = vmatmul.mubr.bf16.gmra.mxu0 %v1267
  %v1303 = vpop.f32.mrf.mxu0
  %v1304 = vadd.f32 0.0, %v1303
  %v1305 = vpop.f32.mrf.mxu0
  %v1306 = vpop.f32.mrf.mxu0
  %v1307 = vpop.f32.mrf.mxu0
  %1308 = vdwg.mxu0
  %v1309 = vadd.f32 %v1261, %v1304
  %v1310 = vxor.u32 %v1309, 2147483648
  %v1311 = vmul.f32 %v1310, 1.442695
  %v1312 = vpow.pop %v1311
  %v1313 = vadd.f32 %v1312, 1.0
  %v1314 = vrcp.pop %v1313
  %v1315 = vmul.f32 1.0, %v1314
  %v1316 = vtanh.pop %v1309
  %v1317 = vmul.f32 %v1315, %v1254
  %1319 = vrot.lane.b32.xlu0 %v1316, 64
  %v1320 = vpop.permute.xlu0 %1319
  %v1322 = vmul.f32 %v1315, %v1320
  %1324 = vrot.lane.b32.xlu0 %v1322, 32
  %v1325 = vpop.permute.xlu0 %1324
  %v1327 = vadd.f32 %v1317, %v1325
  %v1328 = vtanh.pop %v1327
  %1330 = vrot.lane.b32.xlu0 %v1328, 64
  %v1331 = vpop.permute.xlu0 %1330
  %v1333 = vmul.f32 %v1315, %v1331
  %v1334 = vld [vmem:[%s581] sm:$0xff]
  %v1335 = vpack.c.bf16 %v1333, %v1333
  %1337 = vrot.lane.b32.xlu0 %v1335, 32
  %v1338 = vpop.permute.xlu0 %1337
  %v1340 = vsel %vm179, %v1338, 0
  %1342 = vmatprep.subr.bf16.mxu0 0
  %1343 = vmatpush1.bf16.msra.mxu0 0
  %1344 = vmatprep.subr.bf16.mxu0 0
  %1345 = vmatpush1.bf16.msra.mxu0 0
  %1346 = vmatprep.subr.bf16.mxu0 0
  %1347 = vmatpush1.bf16.msra.mxu0 0
  %1348 = vmatprep.subr.bf16.mxu0 0
  %1349 = vmatpush1.bf16.msra.mxu0 0
  %1350 = vmatprep.subr.bf16.mxu0 0
  %1351 = vmatpush1.bf16.msra.mxu0 0
  %1352 = vmatprep.subr.bf16.mxu0 0
  %1353 = vmatpush1.bf16.msra.mxu0 0
  %1354 = vmatprep.subr.bf16.mxu0 0
  %1355 = vmatpush1.bf16.msra.mxu0 %v974
  %1356 = vmatprep.subr.bf16.mxu0 0
  %1357 = vmatpush1.bf16.msra.mxu0 %v973
  %1358 = vmatprep.subr.bf16.mxu0 0
  %1359 = vmatpush2.bf16.msra.mxu0 0
  %1360 = vmatprep.subr.bf16.mxu0 0
  %1361 = vmatpush2.bf16.msra.mxu0 0
  %1362 = vmatprep.subr.bf16.mxu0 0
  %1363 = vmatpush2.bf16.msra.mxu0 0
  %1364 = vmatprep.subr.bf16.mxu0 0
  %1365 = vmatpush2.bf16.msra.mxu0 0
  %1366 = vmatprep.subr.bf16.mxu0 0
  %1367 = vmatpush2.bf16.msra.mxu0 0
  %1368 = vmatprep.subr.bf16.mxu0 0
  %1369 = vmatpush2.bf16.msra.mxu0 0
  %1370 = vmatprep.subr.bf16.mxu0 0
  %1371 = vmatpush2.bf16.msra.mxu0 0
  %1372 = vmatprep.subr.bf16.mxu0 0
  %1373 = vmatpush2.bf16.msra.mxu0 0
  %1374 = vmatprep.mubr.bf16.mxu0 0
  %1375 = vmatmul.mubr.bf16.gmra.mxu0 %v1340
  %v1376 = vpop.f32.mrf.mxu0
  %v1377 = vadd.f32 0.0, %v1376
  %v1378 = vpop.f32.mrf.mxu0
  %v1379 = vpop.f32.mrf.mxu0
  %v1380 = vpop.f32.mrf.mxu0
  %1381 = vdwg.mxu0
  %v1382 = vadd.f32 %v1334, %v1377
  %v1383 = vxor.u32 %v1382, 2147483648
  %v1384 = vmul.f32 %v1383, 1.442695
  %v1385 = vpow.pop %v1384
  %v1386 = vadd.f32 %v1385, 1.0
  %v1387 = vrcp.pop %v1386
  %v1388 = vmul.f32 1.0, %v1387
  %v1389 = vtanh.pop %v1382
  %v1390 = vmul.f32 %v1388, %v1327
  %1392 = vrot.lane.b32.xlu0 %v1389, 64
  %v1393 = vpop.permute.xlu0 %1392
  %v1395 = vmul.f32 %v1388, %v1393
  %1397 = vrot.lane.b32.xlu0 %v1395, 32
  %v1398 = vpop.permute.xlu0 %1397
  %v1400 = vadd.f32 %v1390, %v1398
  %v1401 = vtanh.pop %v1400
  %1403 = vrot.lane.b32.xlu0 %v1401, 64
  %v1404 = vpop.permute.xlu0 %1403
  %v1406 = vmul.f32 %v1388, %v1404
  %v1407 = vld [vmem:[%s662] sm:$0xff]
  %v1408 = vpack.c.bf16 %v1406, %v1406
  %1410 = vrot.lane.b32.xlu0 %v1408, 32
  %v1411 = vpop.permute.xlu0 %1410
  %v1413 = vsel %vm179, %v1411, 0
  %1415 = vmatprep.subr.bf16.mxu0 0
  %1416 = vmatpush1.bf16.msra.mxu0 0
  %1417 = vmatprep.subr.bf16.mxu0 0
  %1418 = vmatpush1.bf16.msra.mxu0 0
  %1419 = vmatprep.subr.bf16.mxu0 0
  %1420 = vmatpush1.bf16.msra.mxu0 0
  %1421 = vmatprep.subr.bf16.mxu0 0
  %1422 = vmatpush1.bf16.msra.mxu0 0
  %1423 = vmatprep.subr.bf16.mxu0 0
  %1424 = vmatpush1.bf16.msra.mxu0 0
  %1425 = vmatprep.subr.bf16.mxu0 0
  %1426 = vmatpush1.bf16.msra.mxu0 0
  %1427 = vmatprep.subr.bf16.mxu0 0
  %1428 = vmatpush1.bf16.msra.mxu0 %v974
  %1429 = vmatprep.subr.bf16.mxu0 0
  %1430 = vmatpush1.bf16.msra.mxu0 %v973
  %1431 = vmatprep.subr.bf16.mxu0 0
  %1432 = vmatpush2.bf16.msra.mxu0 0
  %1433 = vmatprep.subr.bf16.mxu0 0
  %1434 = vmatpush2.bf16.msra.mxu0 0
  %1435 = vmatprep.subr.bf16.mxu0 0
  %1436 = vmatpush2.bf16.msra.mxu0 0
  %1437 = vmatprep.subr.bf16.mxu0 0
  %1438 = vmatpush2.bf16.msra.mxu0 0
  %1439 = vmatprep.subr.bf16.mxu0 0
  %1440 = vmatpush2.bf16.msra.mxu0 0
  %1441 = vmatprep.subr.bf16.mxu0 0
  %1442 = vmatpush2.bf16.msra.mxu0 0
  %1443 = vmatprep.subr.bf16.mxu0 0
  %1444 = vmatpush2.bf16.msra.mxu0 0
  %1445 = vmatprep.subr.bf16.mxu0 0
  %1446 = vmatpush2.bf16.msra.mxu0 0
  %1447 = vmatprep.mubr.bf16.mxu0 0
  %1448 = vmatmul.mubr.bf16.gmra.mxu0 %v1413
  %v1449 = vpop.f32.mrf.mxu0
  %v1450 = vadd.f32 0.0, %v1449
  %v1451 = vpop.f32.mrf.mxu0
  %v1452 = vpop.f32.mrf.mxu0
  %v1453 = vpop.f32.mrf.mxu0
  %1454 = vdwg.mxu0
  %v1455 = vadd.f32 %v1407, %v1450
  %v1456 = vxor.u32 %v1455, 2147483648
  %v1457 = vmul.f32 %v1456, 1.442695
  %v1458 = vpow.pop %v1457
  %v1459 = vadd.f32 %v1458, 1.0
  %v1460 = vrcp.pop %v1459
  %v1461 = vmul.f32 1.0, %v1460
  %v1462 = vtanh.pop %v1455
  %v1463 = vmul.f32 %v1461, %v1400
  %1465 = vrot.lane.b32.xlu0 %v1462, 64
  %v1466 = vpop.permute.xlu0 %1465
  %v1468 = vmul.f32 %v1461, %v1466
  %1470 = vrot.lane.b32.xlu0 %v1468, 32
  %v1471 = vpop.permute.xlu0 %1470
  %v1473 = vadd.f32 %v1463, %v1471
  %v1474 = vtanh.pop %v1473
  %1476 = vrot.lane.b32.xlu0 %v1474, 64
  %v1477 = vpop.permute.xlu0 %1476
  %v1479 = vmul.f32 %v1461, %v1477
  %v1480 = vld [vmem:[%s743] sm:$0xff]
  %v1481 = vpack.c.bf16 %v1479, %v1479
  %1483 = vrot.lane.b32.xlu0 %v1481, 32
  %v1484 = vpop.permute.xlu0 %1483
  %v1486 = vsel %vm179, %v1484, 0
  %1488 = vmatprep.subr.bf16.mxu0 0
  %1489 = vmatpush1.bf16.msra.mxu0 0
  %1490 = vmatprep.subr.bf16.mxu0 0
  %1491 = vmatpush1.bf16.msra.mxu0 0
  %1492 = vmatprep.subr.bf16.mxu0 0
  %1493 = vmatpush1.bf16.msra.mxu0 0
  %1494 = vmatprep.subr.bf16.mxu0 0
  %1495 = vmatpush1.bf16.msra.mxu0 0
  %1496 = vmatprep.subr.bf16.mxu0 0
  %1497 = vmatpush1.bf16.msra.mxu0 0
  %1498 = vmatprep.subr.bf16.mxu0 0
  %1499 = vmatpush1.bf16.msra.mxu0 0
  %1500 = vmatprep.subr.bf16.mxu0 0
  %1501 = vmatpush1.bf16.msra.mxu0 %v974
  %1502 = vmatprep.subr.bf16.mxu0 0
  %1503 = vmatpush1.bf16.msra.mxu0 %v973
  %1504 = vmatprep.subr.bf16.mxu0 0
  %1505 = vmatpush2.bf16.msra.mxu0 0
  %1506 = vmatprep.subr.bf16.mxu0 0
  %1507 = vmatpush2.bf16.msra.mxu0 0
  %1508 = vmatprep.subr.bf16.mxu0 0
  %1509 = vmatpush2.bf16.msra.mxu0 0
  %1510 = vmatprep.subr.bf16.mxu0 0
  %1511 = vmatpush2.bf16.msra.mxu0 0
  %1512 = vmatprep.subr.bf16.mxu0 0
  %1513 = vmatpush2.bf16.msra.mxu0 0
  %1514 = vmatprep.subr.bf16.mxu0 0
  %1515 = vmatpush2.bf16.msra.mxu0 0
  %1516 = vmatprep.subr.bf16.mxu0 0
  %1517 = vmatpush2.bf16.msra.mxu0 0
  %1518 = vmatprep.subr.bf16.mxu0 0
  %1519 = vmatpush2.bf16.msra.mxu0 0
  %1520 = vmatprep.mubr.bf16.mxu0 0
  %1521 = vmatmul.mubr.bf16.gmra.mxu0 %v1486
  %v1522 = vpop.f32.mrf.mxu0
  %v1523 = vadd.f32 0.0, %v1522
  %v1524 = vpop.f32.mrf.mxu0
  %v1525 = vpop.f32.mrf.mxu0
  %v1526 = vpop.f32.mrf.mxu0
  %1527 = vdwg.mxu0
  %v1528 = vadd.f32 %v1480, %v1523
  %v1529 = vxor.u32 %v1528, 2147483648
  %v1530 = vmul.f32 %v1529, 1.442695
  %v1531 = vpow.pop %v1530
  %v1532 = vadd.f32 %v1531, 1.0
  %v1533 = vrcp.pop %v1532
  %v1534 = vmul.f32 1.0, %v1533
  %v1535 = vtanh.pop %v1528
  %v1536 = vmul.f32 %v1534, %v1473
  %1538 = vrot.lane.b32.xlu0 %v1535, 64
  %v1539 = vpop.permute.xlu0 %1538
  %v1541 = vmul.f32 %v1534, %v1539
  %1543 = vrot.lane.b32.xlu0 %v1541, 32
  %v1544 = vpop.permute.xlu0 %1543
  %v1546 = vadd.f32 %v1536, %v1544
  %v1547 = vtanh.pop %v1546
  %1549 = vrot.lane.b32.xlu0 %v1547, 64
  %v1550 = vpop.permute.xlu0 %1549
  %v1552 = vmul.f32 %v1534, %v1550
  %v1553 = vpack.c.bf16 %v1552, %v1552
  %v1554 = vld [vmem:[%s7] sm:$0xf]
  %v1555 = vld [vmem:[%s7 + $0x4] sm:$0xf]
  %v1556 = vld [vmem:[%s7 + $0x8] sm:$0xf]
  %v1557 = vld [vmem:[%s7 + $0xc] sm:$0xf]
  %v1558 = vld [vmem:[%s8] sm:$0x1]
  %v1560 = vlaneseq
  %v1561 = vshrl.u32 %v1560, 7
  %v1562 = vsub.s32 0, %v1561
  %v1563 = vrot.slane %v1558, %v1562
  %1566 = vrot.lane.b32.xlu0 %v1553, 32
  %v1567 = vpop.permute.xlu0 %1566
  %v1572 = vunpack.c.l.b16 %v1554
  %v1573 = vunpack.c.l.b16 %v1555
  %v1574 = vunpack.c.l.b16 %v1556
  %v1575 = vunpack.c.l.b16 %v1557
  %v1576 = vpack.c.b16 %v1573, %v1572
  %v1577 = vpack.c.b16 %v1575, %v1574
  %v1581 = vsel %vm179, %v1567, 0
  %1583 = vmatprep.subr.bf16.mxu0 0
  %1584 = vmatpush1.bf16.msra.mxu0 0
  %1585 = vmatprep.subr.bf16.mxu0 0
  %1586 = vmatpush1.bf16.msra.mxu0 0
  %1587 = vmatprep.subr.bf16.mxu0 0
  %1588 = vmatpush1.bf16.msra.mxu0 0
  %1589 = vmatprep.subr.bf16.mxu0 0
  %1590 = vmatpush1.bf16.msra.mxu0 0
  %1591 = vmatprep.subr.bf16.mxu0 0
  %1592 = vmatpush1.bf16.msra.mxu0 0
  %1593 = vmatprep.subr.bf16.mxu0 0
  %1594 = vmatpush1.bf16.msra.mxu0 0
  %1595 = vmatprep.subr.bf16.mxu0 0
  %1596 = vmatpush1.bf16.msra.mxu0 %v1577
  %1597 = vmatprep.subr.bf16.mxu0 0
  %1598 = vmatpush1.bf16.msra.mxu0 %v1576
  %1599 = vmatprep.subr.bf16.mxu0 0
  %1600 = vmatpush2.bf16.msra.mxu0 0
  %1601 = vmatprep.subr.bf16.mxu0 0
  %1602 = vmatpush2.bf16.msra.mxu0 0
  %1603 = vmatprep.subr.bf16.mxu0 0
  %1604 = vmatpush2.bf16.msra.mxu0 0
  %1605 = vmatprep.subr.bf16.mxu0 0
  %1606 = vmatpush2.bf16.msra.mxu0 0
  %1607 = vmatprep.subr.bf16.mxu0 0
  %1608 = vmatpush2.bf16.msra.mxu0 0
  %1609 = vmatprep.subr.bf16.mxu0 0
  %1610 = vmatpush2.bf16.msra.mxu0 0
  %1611 = vmatprep.subr.bf16.mxu0 0
  %1612 = vmatpush2.bf16.msra.mxu0 0
  %1613 = vmatprep.subr.bf16.mxu0 0
  %1614 = vmatpush2.bf16.msra.mxu0 0
  %1615 = vmatprep.mubr.bf16.mxu0 0
  %1616 = vmatmul.mubr.bf16.gmra.mxu0 %v1581
  %v1617 = vpop.f32.mrf.mxu0
  %v1618 = vadd.f32 %v1563, %v1617
  %v1619 = vpop.f32.mrf.mxu0
  %v1620 = vpop.f32.mrf.mxu0
  %v1621 = vpop.f32.mrf.mxu0
  %1622 = vdwg.mxu0
  %vm1623 = vcmask 31744
  %1624 = vst.msk [vmem:[%s9] sm:$0xff] %vm1623, %v1618
  // Predicated region
  $region38: #{sentiment_lstm_forward.1} parent=0 // pred_check
    _
  $region39: #{sentiment_lstm_forward.1} parent=0 // pred_check_branch
    %1626 = sbr.rel (0) target = $region41
  $region40: #{sentiment_lstm_forward.1} parent=0 // pred_region
    _
  $region41: #{sentiment_lstm_forward.1} parent=0 // pred_fallthru
    _
  // Predicated region
  $region42: #{sentiment_lstm_forward.1} parent=0 // pred_check
    _
  $region43: #{sentiment_lstm_forward.1} parent=0 // pred_check_branch
    %1628 = sbr.rel (0) target = $region45
  $region44: #{sentiment_lstm_forward.1} parent=0 // pred_region
    _
  $region45: #{sentiment_lstm_forward.1} parent=0 // pred_fallthru
    _

</llo_original>
